<compile_context>
chip_gen: v5e
topology: v5e:2x2
jax: 0.10.0
libtpu: 0.0.40
codegen_flags: <defaults>
</compile_context>

<pallas_src>
import math

import jax
import jax.numpy as jnp
from jax.experimental import pallas as pl
from jax.experimental.pallas import tpu as pltpu


def _round_up(x, m):
    return ((x + m - 1) // m) * m


def _cconvT_phase_matmul_kernel(w_ref, p_ref, o_ref):
    # w_ref: (Co2p, Kp)  bf16 per-phase combined weight (bias column folded in)
    # p_ref: (Kp, MT)    bf16 per-phase patch tile; lanes = flattened (n, qh, qw)
    # o_ref: (Co2p, MT)  f32  lane-dense store; pure matmul epilogue
    o_ref[...] = jnp.dot(w_ref[...], p_ref[...],
                         preferred_element_type=jnp.float32)


def _phase_geometry(in_size, out_size, ksize, stride, padding, dilation):
    """Per-axis sub-pixel decomposition geometry for a transposed conv.

    Output o receives x[i]*W[k] where i*stride + k*dilation = o + padding.
    With u = o + padding = q*stride + ph, a tap k (phase (k*d) % stride,
    shift r = (k*d)//stride) contributes x[q - r]*W[k].  A COMMON q range
    [q_min, q_min+Q) is used for all phases so the phases re-interleave with a
    plain reshape; x is zero-padded so every (tap, q) window is in bounds.
    """
    s, p, d = stride, padding, dilation
    max_r = ((ksize - 1) * d) // s
    q_min = -(-(p - (s - 1)) // s)            # ceil((p - (s-1)) / s), always >= 0
    q_max = (out_size + p - 1) // s
    Q = q_max - q_min + 1
    pad_lo = max(0, max_r - q_min)
    pad_hi = max(0, q_max + 1 - in_size)
    taps = []                                  # per phase: list of (k, slice_start)
    for ph in range(s):
        tl = []
        for k in range(ksize):
            if (k * d) % s == ph:
                r = (k * d) // s
                tl.append((k, q_min - r + pad_lo))
        taps.append(tl)
    return dict(Q=Q, q_min=q_min, pad_lo=pad_lo, pad_hi=pad_hi, taps=taps)


def complex_conv_transpose2d(x, w_real, w_imag, b_real, b_imag, *,
                             stride=1, padding=0, dilation=1):
    """Forward of ComplexConvTranspose2d.

    x:             complex64 (N, Cin, H, W)
    w_real/w_imag: float32  (Cin, Cout, KH, KW)   (PyTorch ConvTranspose2d layout)
    b_real/b_imag: float32  (Cout,) or None
    returns        complex64 (N, Cout, Ho, Wo)
    """
    s, p, d = stride, padding, dilation
    N, Cin, H, W = x.shape
    Cin_w, Cout, KH, KW = w_real.shape
    assert Cin_w == Cin and w_imag.shape == w_real.shape
    Cin2, Co2 = 2 * Cin, 2 * Cout

    Ho = (H - 1) * s - 2 * p + d * (KH - 1) + 1
    Wo = (W - 1) * s - 2 * p + d * (KW - 1) + 1

    # [real; imag] input channels, channel-major so lane flattening is n-major.
    x2 = jnp.concatenate([jnp.real(x), jnp.imag(x)], axis=1).astype(jnp.bfloat16)
    xpt = x2.transpose(1, 0, 2, 3)                           # (Cin2, N, H, W)

    # Combined complex weight: per tap a (Cin2, Co2) matrix.
    #   out[:Cout] = xr*Wr - xi*Wi ; out[Cout:] = xr*Wi + xi*Wr
    wr = w_real.astype(jnp.float32)
    wi = w_imag.astype(jnp.float32)
    w_comb = jnp.concatenate(
        [jnp.concatenate([wr, wi], axis=1),
         jnp.concatenate([-wi, wr], axis=1)], axis=0)        # (Cin2, Co2, KH, KW)
    if b_real is None:
        b_comb = jnp.zeros((Co2,), jnp.float32)
    else:
        br = b_real.astype(jnp.float32)
        bi = b_imag.astype(jnp.float32)
        b_comb = jnp.concatenate([br - bi, br + bi])

    gh = _phase_geometry(H, Ho, KH, s, p, d)
    gw = _phase_geometry(W, Wo, KW, s, p, d)
    Qh, Qw = gh["Q"], gw["Q"]
    Mln = N * Qh * Qw                                        # matmul M per phase
    xp = jnp.pad(xpt, ((0, 0), (0, 0),
                       (gh["pad_lo"], gh["pad_hi"]),
                       (gw["pad_lo"], gw["pad_hi"])))

    PH = s * s
    K_list = [Cin2 * len(gh["taps"][ph_h]) * len(gw["taps"][ph_w]) + 1
              for ph_h in range(s) for ph_w in range(s)]
    Kp = _round_up(max(K_list), 16)          # bf16 sublane packing of the patch
    Co2p = _round_up(Co2, 16)                # bf16 sublane packing of the weight

    # Per-phase (bias-folded) weight and patch matrices, built from the
    # UNDILATED padded input: no zero-dilation scatter, no KH*KW-wide im2col.
    phase_patches, phase_weights = [], []
    for ph_h in range(s):
        for ph_w in range(s):
            slabs, wrows = [], []
            for (kh, ah) in gh["taps"][ph_h]:
                for (kw, aw) in gw["taps"][ph_w]:
                    slabs.append(xp[:, :, ah:ah + Qh, aw:aw + Qw])  # (Cin2,N,Qh,Qw)
                    wrows.append(w_comb[:, :, kh, kw])              # (Cin2, Co2)
            slabs.append(jnp.ones((1, N, Qh, Qw), x2.dtype))        # bias row
            wrows.append(b_comb[None, :])                           # bias column
            patch = jnp.concatenate(slabs, axis=0)                  # (Kph, N, Qh, Qw)
            wmat = jnp.concatenate(wrows, axis=0)                   # (Kph, Co2)
            kph = patch.shape[0]
            patch = jnp.pad(patch.reshape(kph, Mln), ((0, Kp - kph), (0, 0)))
            wmat = jnp.pad(wmat, ((0, Kp - kph), (0, Co2p - Co2)))
            phase_patches.append(patch)
            phase_weights.append(wmat.T)                            # (Co2p, Kp)

    # One big lane-dense M tile when it fits a conservative VMEM budget
    # (safe on v7x's 64 MiB); otherwise halve.  Always a multiple of 128.
    def _step_vmem(mt):
        return 2 * (Kp * mt * 2 + Co2p * mt * 4 + Co2p * Kp * 2)

    MT = _round_up(Mln, 128)
    VMEM_BUDGET = 40 * 1024 * 1024
    while MT > 512 and _step_vmem(MT) > VMEM_BUDGET:
        MT = _round_up(MT // 2, 128)
    Mln_pad = _round_up(Mln, MT)
    NT = Mln_pad // MT

    patches = jnp.stack(phase_patches, axis=0)                      # (PH, Kp, Mln)
    patches = jnp.pad(patches, ((0, 0), (0, 0), (0, Mln_pad - Mln)))
    patches = patches.astype(jnp.bfloat16)
    weights = jnp.stack(phase_weights, axis=0).astype(jnp.bfloat16)  # (PH, Co2p, Kp)

    cost = pl.CostEstimate(
        flops=2 * PH * Co2p * Kp * Mln_pad,
        transcendentals=0,
        bytes_accessed=2 * PH * (Co2p * Kp + Kp * Mln_pad) + 4 * PH * Co2p * Mln_pad,
    )

    out_all = pl.pallas_call(
        _cconvT_phase_matmul_kernel,
        out_shape=jax.ShapeDtypeStruct((PH, Co2p, Mln_pad), jnp.float32),
        grid_spec=pltpu.PrefetchScalarGridSpec(
            num_scalar_prefetch=0,
            grid=(PH, NT),
            in_specs=[
                pl.BlockSpec((None, Co2p, Kp), lambda ph, m: (ph, 0, 0)),  # weight
                pl.BlockSpec((None, Kp, MT), lambda ph, m: (ph, 0, m)),    # patches
            ],
            out_specs=pl.BlockSpec((None, Co2p, MT), lambda ph, m: (ph, 0, m)),
        ),
        compiler_params=pltpu.CompilerParams(
            dimension_semantics=("parallel", "parallel"),
            vmem_limit_bytes=int(min(48 * 1024 * 1024,
                                     max(32 * 1024 * 1024,
                                         _step_vmem(MT) + (4 << 20)))),
        ),
        cost_estimate=cost,
    )(weights, patches)

    # Re-interleave phases: (ph_h, ph_w, co2, n, qh, qw) -> NCHW, crop, pack.
    out = out_all[:, :Co2, :Mln].reshape(s, s, Co2, N, Qh, Qw)
    out = out.transpose(3, 2, 4, 0, 5, 1).reshape(N, Co2, Qh * s, Qw * s)
    oh0 = p - gh["q_min"] * s
    ow0 = p - gw["q_min"] * s
    out = out[:, :, oh0:oh0 + Ho, ow0:ow0 + Wo]
    return jax.lax.complex(out[:, :Cout], out[:, Cout:])


if __name__ == "__main__":
    # Small shapes consistent with the module's forward (2x upsampling config).
    N, Cin, H, W = 2, 4, 16, 16
    Cout, ksz, stride, pad, dil = 8, 4, 2, 1, 1

    key = jax.random.PRNGKey(0)
    k1, k2, k3, k4, k5, k6 = jax.random.split(key, 6)

    xr = jax.random.normal(k1, (N, Cin, H, W), jnp.float32)
    xi = jax.random.normal(k2, (N, Cin, H, W), jnp.float32)
    x = jax.lax.complex(xr, xi)

    # ConvTranspose2d-style uniform init bounds.
    bound = 1.0 / math.sqrt(Cout * ksz * ksz)
    w_real = jax.random.uniform(k3, (Cin, Cout, ksz, ksz), jnp.float32, -bound, bound)
    w_imag = jax.random.uniform(k4, (Cin, Cout, ksz, ksz), jnp.float32, -bound, bound)
    b_real = jax.random.uniform(k5, (Cout,), jnp.float32, -bound, bound)
    b_imag = jax.random.uniform(k6, (Cout,), jnp.float32, -bound, bound)

    fwd = jax.jit(lambda *a: complex_conv_transpose2d(
        *a, stride=stride, padding=pad, dilation=dil))
    out = jax.block_until_ready(fwd(x, w_real, w_imag, b_real, b_imag))

    # --- reference: XLA lhs-dilated conv == PyTorch ConvTranspose2d ---
    def convT_ref(inp, w, b):
        w_flip = jnp.flip(w, axis=(2, 3)).transpose(1, 0, 2, 3)  # (Cout,Cin,KH,KW)
        pe = dil * (ksz - 1) - pad
        y = jax.lax.conv_general_dilated(
            inp, w_flip, window_strides=(1, 1), padding=[(pe, pe), (pe, pe)],
            lhs_dilation=(stride, stride), rhs_dilation=(dil, dil),
            dimension_numbers=("NCHW", "OIHW", "NCHW"))
        return y + b[None, :, None, None]

    ref_real = convT_ref(xr, w_real, b_real) - convT_ref(xi, w_imag, b_imag)
    ref_imag = convT_ref(xi, w_real, b_real) + convT_ref(xr, w_imag, b_imag)

    Ho = (H - 1) * stride - 2 * pad + dil * (ksz - 1) + 1
    assert out.shape == (N, Cout, Ho, Ho), out.shape
    assert jnp.allclose(jnp.real(out), ref_real, atol=5e-2, rtol=5e-2)
    assert jnp.allclose(jnp.imag(out), ref_imag, atol=5e-2, rtol=5e-2)

    print("KERNEL_OK")
</pallas_src>

<mosaic_0001>
module attributes {stable_mosaic.version = 11 : i64} {
  func.func @_cconvT_phase_matmul_kernel(%arg0: i32, %arg1: i32, %arg2: memref<1x16x48xbf16, #tpu.memory_space<vmem>>, %arg3: memref<1x48x640xbf16, #tpu.memory_space<vmem>>, %arg4: memref<1x16x640xf32, #tpu.memory_space<vmem>>) attributes {dimension_semantics = [#tpu.dimension_semantics<parallel>, #tpu.dimension_semantics<parallel>], iteration_bounds = array<i64: 4, 1>, scalar_prefetch = 0 : i64, scratch_operands = 0 : i64, tpu.core_type = #tpu.core_type<tc>, window_params = [{transform_indices = @transform_0, window_bounds = array<i64: 1, 16, 48>}, {transform_indices = @transform_1, window_bounds = array<i64: 1, 48, 640>}, {transform_indices = @transform_2, window_bounds = array<i64: 1, 16, 640>}]} {
    %c0 = arith.constant 0 : index
    %c0_0 = arith.constant 0 : index
    %c0_1 = arith.constant 0 : index
    %0 = vector.load %arg2[%c0, %c0_0, %c0_1] : memref<1x16x48xbf16, #tpu.memory_space<vmem>>, vector<1x16x48xbf16>
    %1 = vector.shape_cast %0 : vector<1x16x48xbf16> to vector<16x48xbf16>
    %c0_2 = arith.constant 0 : index
    %c0_3 = arith.constant 0 : index
    %c0_4 = arith.constant 0 : index
    %2 = vector.load %arg3[%c0_2, %c0_3, %c0_4] : memref<1x48x640xbf16, #tpu.memory_space<vmem>>, vector<1x48x640xbf16>
    %3 = vector.shape_cast %2 : vector<1x48x640xbf16> to vector<48x640xbf16>
    %cst = arith.constant dense<0.000000e+00> : vector<16x640xf32>
    %4 = tpu.matmul %1, %3, %cst {dimension_numbers = #tpu.dot_dimension_numbers<[1], [0], [0], [1], [0, 0, 1, 1], [], []>} : vector<16x48xbf16>, vector<48x640xbf16>, vector<16x640xf32> -> vector<16x640xf32>
    %c0_5 = arith.constant 0 : index
    %c0_6 = arith.constant 0 : index
    %c0_7 = arith.constant 0 : index
    %5 = vector.load %arg4[%c0_5, %c0_6, %c0_7] : memref<1x16x640xf32, #tpu.memory_space<vmem>>, vector<1x16x640xf32>
    %6 = vector.shape_cast %5 : vector<1x16x640xf32> to vector<16x640xf32>
    %7 = vector.shape_cast %4 : vector<16x640xf32> to vector<1x16x640xf32>
    tpu.vector_store %arg4[%c0_5, %c0_6, %c0_7], %7 {strides = array<i32>} : memref<1x16x640xf32, #tpu.memory_space<vmem>>, vector<1x16x640xf32>,
    return
  }
  func.func @transform_0(%arg0: i32, %arg1: i32) -> (i32, i32, i32) {
    %c0_i32 = arith.constant 0 : i32
    %c0_i32_0 = arith.constant 0 : i32
    %c0_i32_1 = arith.constant 0 : i32
    return %arg0, %c0_i32, %c0_i32_0 : i32, i32, i32
  }
  func.func @transform_1(%arg0: i32, %arg1: i32) -> (i32, i32, i32) {
    %c0_i32 = arith.constant 0 : i32
    %c0_i32_0 = arith.constant 0 : i32
    return %arg0, %c0_i32, %arg1 : i32, i32, i32
  }
  func.func @transform_2(%arg0: i32, %arg1: i32) -> (i32, i32, i32) {
    %c0_i32 = arith.constant 0 : i32
    %c0_i32_0 = arith.constant 0 : i32
    return %arg0, %c0_i32, %arg1 : i32, i32, i32
  }
}

</mosaic_0001>

<llo_original>
// kernel: custom-call.1
$region0: #{custom-call.1}
  %s0 = inlined_call_operand.vmem [shape: c64[2,4,16,16], index: 0, kind: input, shape index: {}]
  %s1 = inlined_call_operand.vmem [shape: f32[2,4,16,16], index: 1, kind: output, shape index: {}]
  %s2 = scalar_lea.vmem %s0, 512
  %v3 = vld [vmem:[%s2] sm:$0xff]
  %4 = vst [vmem:[%s1] sm:$0xff] %v3
  %s5 = scalar_lea.vmem %s1, 8
  %s6 = scalar_lea.vmem %s2, 8
  %v7 = vld [vmem:[%s6] sm:$0xff]
  %8 = vst [vmem:[%s5] sm:$0xff] %v7
  %s9 = scalar_lea.vmem %s1, 16
  %s10 = scalar_lea.vmem %s2, 16
  %v11 = vld [vmem:[%s10] sm:$0xff]
  %12 = vst [vmem:[%s9] sm:$0xff] %v11
  %s13 = scalar_lea.vmem %s1, 24
  %s14 = scalar_lea.vmem %s2, 24
  %v15 = vld [vmem:[%s14] sm:$0xff]
  %16 = vst [vmem:[%s13] sm:$0xff] %v15
  %s17 = scalar_lea.vmem %s1, 32
  %s18 = scalar_lea.vmem %s2, 32
  %v19 = vld [vmem:[%s18] sm:$0xff]
  %20 = vst [vmem:[%s17] sm:$0xff] %v19
  %s21 = scalar_lea.vmem %s1, 40
  %s22 = scalar_lea.vmem %s2, 40
  %v23 = vld [vmem:[%s22] sm:$0xff]
  %24 = vst [vmem:[%s21] sm:$0xff] %v23
  %s25 = scalar_lea.vmem %s1, 48
  %s26 = scalar_lea.vmem %s2, 48
  %v27 = vld [vmem:[%s26] sm:$0xff]
  %28 = vst [vmem:[%s25] sm:$0xff] %v27
  %s29 = scalar_lea.vmem %s1, 56
  %s30 = scalar_lea.vmem %s2, 56
  %v31 = vld [vmem:[%s30] sm:$0xff]
  %32 = vst [vmem:[%s29] sm:$0xff] %v31
  %s33 = scalar_lea.vmem %s1, 64
  %s34 = scalar_lea.vmem %s2, 64
  %v35 = vld [vmem:[%s34] sm:$0xff]
  %36 = vst [vmem:[%s33] sm:$0xff] %v35
  %s37 = scalar_lea.vmem %s1, 72
  %s38 = scalar_lea.vmem %s2, 72
  %v39 = vld [vmem:[%s38] sm:$0xff]
  %40 = vst [vmem:[%s37] sm:$0xff] %v39
  %s41 = scalar_lea.vmem %s1, 80
  %s42 = scalar_lea.vmem %s2, 80
  %v43 = vld [vmem:[%s42] sm:$0xff]
  %44 = vst [vmem:[%s41] sm:$0xff] %v43
  %s45 = scalar_lea.vmem %s1, 88
  %s46 = scalar_lea.vmem %s2, 88
  %v47 = vld [vmem:[%s46] sm:$0xff]
  %48 = vst [vmem:[%s45] sm:$0xff] %v47
  %s49 = scalar_lea.vmem %s1, 96
  %s50 = scalar_lea.vmem %s2, 96
  %v51 = vld [vmem:[%s50] sm:$0xff]
  %52 = vst [vmem:[%s49] sm:$0xff] %v51
  %s53 = scalar_lea.vmem %s1, 104
  %s54 = scalar_lea.vmem %s2, 104
  %v55 = vld [vmem:[%s54] sm:$0xff]
  %56 = vst [vmem:[%s53] sm:$0xff] %v55
  %s57 = scalar_lea.vmem %s1, 112
  %s58 = scalar_lea.vmem %s2, 112
  %v59 = vld [vmem:[%s58] sm:$0xff]
  %60 = vst [vmem:[%s57] sm:$0xff] %v59
  %s61 = scalar_lea.vmem %s1, 120
  %s62 = scalar_lea.vmem %s2, 120
  %v63 = vld [vmem:[%s62] sm:$0xff]
  %64 = vst [vmem:[%s61] sm:$0xff] %v63
  %s65 = scalar_lea.vmem %s1, 128
  %s66 = scalar_lea.vmem %s2, 128
  %v67 = vld [vmem:[%s66] sm:$0xff]
  %68 = vst [vmem:[%s65] sm:$0xff] %v67
  %s69 = scalar_lea.vmem %s1, 136
  %s70 = scalar_lea.vmem %s2, 136
  %v71 = vld [vmem:[%s70] sm:$0xff]
  %72 = vst [vmem:[%s69] sm:$0xff] %v71
  %s73 = scalar_lea.vmem %s1, 144
  %s74 = scalar_lea.vmem %s2, 144
  %v75 = vld [vmem:[%s74] sm:$0xff]
  %76 = vst [vmem:[%s73] sm:$0xff] %v75
  %s77 = scalar_lea.vmem %s1, 152
  %s78 = scalar_lea.vmem %s2, 152
  %v79 = vld [vmem:[%s78] sm:$0xff]
  %80 = vst [vmem:[%s77] sm:$0xff] %v79
  %s81 = scalar_lea.vmem %s1, 160
  %s82 = scalar_lea.vmem %s2, 160
  %v83 = vld [vmem:[%s82] sm:$0xff]
  %84 = vst [vmem:[%s81] sm:$0xff] %v83
  %s85 = scalar_lea.vmem %s1, 168
  %s86 = scalar_lea.vmem %s2, 168
  %v87 = vld [vmem:[%s86] sm:$0xff]
  %88 = vst [vmem:[%s85] sm:$0xff] %v87
  %s89 = scalar_lea.vmem %s1, 176
  %s90 = scalar_lea.vmem %s2, 176
  %v91 = vld [vmem:[%s90] sm:$0xff]
  %92 = vst [vmem:[%s89] sm:$0xff] %v91
  %s93 = scalar_lea.vmem %s1, 184
  %s94 = scalar_lea.vmem %s2, 184
  %v95 = vld [vmem:[%s94] sm:$0xff]
  %96 = vst [vmem:[%s93] sm:$0xff] %v95
  %s97 = scalar_lea.vmem %s1, 192
  %s98 = scalar_lea.vmem %s2, 192
  %v99 = vld [vmem:[%s98] sm:$0xff]
  %100 = vst [vmem:[%s97] sm:$0xff] %v99
  %s101 = scalar_lea.vmem %s1, 200
  %s102 = scalar_lea.vmem %s2, 200
  %v103 = vld [vmem:[%s102] sm:$0xff]
  %104 = vst [vmem:[%s101] sm:$0xff] %v103
  %s105 = scalar_lea.vmem %s1, 208
  %s106 = scalar_lea.vmem %s2, 208
  %v107 = vld [vmem:[%s106] sm:$0xff]
  %108 = vst [vmem:[%s105] sm:$0xff] %v107
  %s109 = scalar_lea.vmem %s1, 216
  %s110 = scalar_lea.vmem %s2, 216
  %v111 = vld [vmem:[%s110] sm:$0xff]
  %112 = vst [vmem:[%s109] sm:$0xff] %v111
  %s113 = scalar_lea.vmem %s1, 224
  %s114 = scalar_lea.vmem %s2, 224
  %v115 = vld [vmem:[%s114] sm:$0xff]
  %116 = vst [vmem:[%s113] sm:$0xff] %v115
  %s117 = scalar_lea.vmem %s1, 232
  %s118 = scalar_lea.vmem %s2, 232
  %v119 = vld [vmem:[%s118] sm:$0xff]
  %120 = vst [vmem:[%s117] sm:$0xff] %v119
  %s121 = scalar_lea.vmem %s1, 240
  %s122 = scalar_lea.vmem %s2, 240
  %v123 = vld [vmem:[%s122] sm:$0xff]
  %124 = vst [vmem:[%s121] sm:$0xff] %v123
  %s125 = scalar_lea.vmem %s1, 248
  %s126 = scalar_lea.vmem %s2, 248
  %v127 = vld [vmem:[%s126] sm:$0xff]
  %128 = vst [vmem:[%s125] sm:$0xff] %v127
  %s129 = scalar_lea.vmem %s1, 256
  %s130 = scalar_lea.vmem %s2, 256
  %v131 = vld [vmem:[%s130] sm:$0xff]
  %132 = vst [vmem:[%s129] sm:$0xff] %v131
  %s133 = scalar_lea.vmem %s1, 264
  %s134 = scalar_lea.vmem %s2, 264
  %v135 = vld [vmem:[%s134] sm:$0xff]
  %136 = vst [vmem:[%s133] sm:$0xff] %v135
  %s137 = scalar_lea.vmem %s1, 272
  %s138 = scalar_lea.vmem %s2, 272
  %v139 = vld [vmem:[%s138] sm:$0xff]
  %140 = vst [vmem:[%s137] sm:$0xff] %v139
  %s141 = scalar_lea.vmem %s1, 280
  %s142 = scalar_lea.vmem %s2, 280
  %v143 = vld [vmem:[%s142] sm:$0xff]
  %144 = vst [vmem:[%s141] sm:$0xff] %v143
  %s145 = scalar_lea.vmem %s1, 288
  %s146 = scalar_lea.vmem %s2, 288
  %v147 = vld [vmem:[%s146] sm:$0xff]
  %148 = vst [vmem:[%s145] sm:$0xff] %v147
  %s149 = scalar_lea.vmem %s1, 296
  %s150 = scalar_lea.vmem %s2, 296
  %v151 = vld [vmem:[%s150] sm:$0xff]
  %152 = vst [vmem:[%s149] sm:$0xff] %v151
  %s153 = scalar_lea.vmem %s1, 304
  %s154 = scalar_lea.vmem %s2, 304
  %v155 = vld [vmem:[%s154] sm:$0xff]
  %156 = vst [vmem:[%s153] sm:$0xff] %v155
  %s157 = scalar_lea.vmem %s1, 312
  %s158 = scalar_lea.vmem %s2, 312
  %v159 = vld [vmem:[%s158] sm:$0xff]
  %160 = vst [vmem:[%s157] sm:$0xff] %v159
  %s161 = scalar_lea.vmem %s1, 320
  %s162 = scalar_lea.vmem %s2, 320
  %v163 = vld [vmem:[%s162] sm:$0xff]
  %164 = vst [vmem:[%s161] sm:$0xff] %v163
  %s165 = scalar_lea.vmem %s1, 328
  %s166 = scalar_lea.vmem %s2, 328
  %v167 = vld [vmem:[%s166] sm:$0xff]
  %168 = vst [vmem:[%s165] sm:$0xff] %v167
  %s169 = scalar_lea.vmem %s1, 336
  %s170 = scalar_lea.vmem %s2, 336
  %v171 = vld [vmem:[%s170] sm:$0xff]
  %172 = vst [vmem:[%s169] sm:$0xff] %v171
  %s173 = scalar_lea.vmem %s1, 344
  %s174 = scalar_lea.vmem %s2, 344
  %v175 = vld [vmem:[%s174] sm:$0xff]
  %176 = vst [vmem:[%s173] sm:$0xff] %v175
  %s177 = scalar_lea.vmem %s1, 352
  %s178 = scalar_lea.vmem %s2, 352
  %v179 = vld [vmem:[%s178] sm:$0xff]
  %180 = vst [vmem:[%s177] sm:$0xff] %v179
  %s181 = scalar_lea.vmem %s1, 360
  %s182 = scalar_lea.vmem %s2, 360
  %v183 = vld [vmem:[%s182] sm:$0xff]
  %184 = vst [vmem:[%s181] sm:$0xff] %v183
  %s185 = scalar_lea.vmem %s1, 368
  %s186 = scalar_lea.vmem %s2, 368
  %v187 = vld [vmem:[%s186] sm:$0xff]
  %188 = vst [vmem:[%s185] sm:$0xff] %v187
  %s189 = scalar_lea.vmem %s1, 376
  %s190 = scalar_lea.vmem %s2, 376
  %v191 = vld [vmem:[%s190] sm:$0xff]
  %192 = vst [vmem:[%s189] sm:$0xff] %v191
  %s193 = scalar_lea.vmem %s1, 384
  %s194 = scalar_lea.vmem %s2, 384
  %v195 = vld [vmem:[%s194] sm:$0xff]
  %196 = vst [vmem:[%s193] sm:$0xff] %v195
  %s197 = scalar_lea.vmem %s1, 392
  %s198 = scalar_lea.vmem %s2, 392
  %v199 = vld [vmem:[%s198] sm:$0xff]
  %200 = vst [vmem:[%s197] sm:$0xff] %v199
  %s201 = scalar_lea.vmem %s1, 400
  %s202 = scalar_lea.vmem %s2, 400
  %v203 = vld [vmem:[%s202] sm:$0xff]
  %204 = vst [vmem:[%s201] sm:$0xff] %v203
  %s205 = scalar_lea.vmem %s1, 408
  %s206 = scalar_lea.vmem %s2, 408
  %v207 = vld [vmem:[%s206] sm:$0xff]
  %208 = vst [vmem:[%s205] sm:$0xff] %v207
  %s209 = scalar_lea.vmem %s1, 416
  %s210 = scalar_lea.vmem %s2, 416
  %v211 = vld [vmem:[%s210] sm:$0xff]
  %212 = vst [vmem:[%s209] sm:$0xff] %v211
  %s213 = scalar_lea.vmem %s1, 424
  %s214 = scalar_lea.vmem %s2, 424
  %v215 = vld [vmem:[%s214] sm:$0xff]
  %216 = vst [vmem:[%s213] sm:$0xff] %v215
  %s217 = scalar_lea.vmem %s1, 432
  %s218 = scalar_lea.vmem %s2, 432
  %v219 = vld [vmem:[%s218] sm:$0xff]
  %220 = vst [vmem:[%s217] sm:$0xff] %v219
  %s221 = scalar_lea.vmem %s1, 440
  %s222 = scalar_lea.vmem %s2, 440
  %v223 = vld [vmem:[%s222] sm:$0xff]
  %224 = vst [vmem:[%s221] sm:$0xff] %v223
  %s225 = scalar_lea.vmem %s1, 448
  %s226 = scalar_lea.vmem %s2, 448
  %v227 = vld [vmem:[%s226] sm:$0xff]
  %228 = vst [vmem:[%s225] sm:$0xff] %v227
  %s229 = scalar_lea.vmem %s1, 456
  %s230 = scalar_lea.vmem %s2, 456
  %v231 = vld [vmem:[%s230] sm:$0xff]
  %232 = vst [vmem:[%s229] sm:$0xff] %v231
  %s233 = scalar_lea.vmem %s1, 464
  %s234 = scalar_lea.vmem %s2, 464
  %v235 = vld [vmem:[%s234] sm:$0xff]
  %236 = vst [vmem:[%s233] sm:$0xff] %v235
  %s237 = scalar_lea.vmem %s1, 472
  %s238 = scalar_lea.vmem %s2, 472
  %v239 = vld [vmem:[%s238] sm:$0xff]
  %240 = vst [vmem:[%s237] sm:$0xff] %v239
  %s241 = scalar_lea.vmem %s1, 480
  %s242 = scalar_lea.vmem %s2, 480
  %v243 = vld [vmem:[%s242] sm:$0xff]
  %244 = vst [vmem:[%s241] sm:$0xff] %v243
  %s245 = scalar_lea.vmem %s1, 488
  %s246 = scalar_lea.vmem %s2, 488
  %v247 = vld [vmem:[%s246] sm:$0xff]
  %248 = vst [vmem:[%s245] sm:$0xff] %v247
  %s249 = scalar_lea.vmem %s1, 496
  %s250 = scalar_lea.vmem %s2, 496
  %v251 = vld [vmem:[%s250] sm:$0xff]
  %252 = vst [vmem:[%s249] sm:$0xff] %v251
  %s253 = scalar_lea.vmem %s1, 504
  %s254 = scalar_lea.vmem %s2, 504
  %v255 = vld [vmem:[%s254] sm:$0xff]
  %256 = vst [vmem:[%s253] sm:$0xff] %v255

// kernel: custom-call
$region0: #{custom-call}
  %s0 = inlined_call_operand.vmem [shape: c64[2,4,16,16], index: 0, kind: input, shape index: {}]
  %s1 = inlined_call_operand.vmem [shape: f32[2,4,16,16], index: 1, kind: output, shape index: {}]
  %v2 = vld [vmem:[%s0] sm:$0xff]
  %3 = vst [vmem:[%s1] sm:$0xff] %v2
  %s4 = scalar_lea.vmem %s1, 8
  %s5 = scalar_lea.vmem %s0, 8
  %v6 = vld [vmem:[%s5] sm:$0xff]
  %7 = vst [vmem:[%s4] sm:$0xff] %v6
  %s8 = scalar_lea.vmem %s1, 16
  %s9 = scalar_lea.vmem %s0, 16
  %v10 = vld [vmem:[%s9] sm:$0xff]
  %11 = vst [vmem:[%s8] sm:$0xff] %v10
  %s12 = scalar_lea.vmem %s1, 24
  %s13 = scalar_lea.vmem %s0, 24
  %v14 = vld [vmem:[%s13] sm:$0xff]
  %15 = vst [vmem:[%s12] sm:$0xff] %v14
  %s16 = scalar_lea.vmem %s1, 32
  %s17 = scalar_lea.vmem %s0, 32
  %v18 = vld [vmem:[%s17] sm:$0xff]
  %19 = vst [vmem:[%s16] sm:$0xff] %v18
  %s20 = scalar_lea.vmem %s1, 40
  %s21 = scalar_lea.vmem %s0, 40
  %v22 = vld [vmem:[%s21] sm:$0xff]
  %23 = vst [vmem:[%s20] sm:$0xff] %v22
  %s24 = scalar_lea.vmem %s1, 48
  %s25 = scalar_lea.vmem %s0, 48
  %v26 = vld [vmem:[%s25] sm:$0xff]
  %27 = vst [vmem:[%s24] sm:$0xff] %v26
  %s28 = scalar_lea.vmem %s1, 56
  %s29 = scalar_lea.vmem %s0, 56
  %v30 = vld [vmem:[%s29] sm:$0xff]
  %31 = vst [vmem:[%s28] sm:$0xff] %v30
  %s32 = scalar_lea.vmem %s1, 64
  %s33 = scalar_lea.vmem %s0, 64
  %v34 = vld [vmem:[%s33] sm:$0xff]
  %35 = vst [vmem:[%s32] sm:$0xff] %v34
  %s36 = scalar_lea.vmem %s1, 72
  %s37 = scalar_lea.vmem %s0, 72
  %v38 = vld [vmem:[%s37] sm:$0xff]
  %39 = vst [vmem:[%s36] sm:$0xff] %v38
  %s40 = scalar_lea.vmem %s1, 80
  %s41 = scalar_lea.vmem %s0, 80
  %v42 = vld [vmem:[%s41] sm:$0xff]
  %43 = vst [vmem:[%s40] sm:$0xff] %v42
  %s44 = scalar_lea.vmem %s1, 88
  %s45 = scalar_lea.vmem %s0, 88
  %v46 = vld [vmem:[%s45] sm:$0xff]
  %47 = vst [vmem:[%s44] sm:$0xff] %v46
  %s48 = scalar_lea.vmem %s1, 96
  %s49 = scalar_lea.vmem %s0, 96
  %v50 = vld [vmem:[%s49] sm:$0xff]
  %51 = vst [vmem:[%s48] sm:$0xff] %v50
  %s52 = scalar_lea.vmem %s1, 104
  %s53 = scalar_lea.vmem %s0, 104
  %v54 = vld [vmem:[%s53] sm:$0xff]
  %55 = vst [vmem:[%s52] sm:$0xff] %v54
  %s56 = scalar_lea.vmem %s1, 112
  %s57 = scalar_lea.vmem %s0, 112
  %v58 = vld [vmem:[%s57] sm:$0xff]
  %59 = vst [vmem:[%s56] sm:$0xff] %v58
  %s60 = scalar_lea.vmem %s1, 120
  %s61 = scalar_lea.vmem %s0, 120
  %v62 = vld [vmem:[%s61] sm:$0xff]
  %63 = vst [vmem:[%s60] sm:$0xff] %v62
  %s64 = scalar_lea.vmem %s1, 128
  %s65 = scalar_lea.vmem %s0, 128
  %v66 = vld [vmem:[%s65] sm:$0xff]
  %67 = vst [vmem:[%s64] sm:$0xff] %v66
  %s68 = scalar_lea.vmem %s1, 136
  %s69 = scalar_lea.vmem %s0, 136
  %v70 = vld [vmem:[%s69] sm:$0xff]
  %71 = vst [vmem:[%s68] sm:$0xff] %v70
  %s72 = scalar_lea.vmem %s1, 144
  %s73 = scalar_lea.vmem %s0, 144
  %v74 = vld [vmem:[%s73] sm:$0xff]
  %75 = vst [vmem:[%s72] sm:$0xff] %v74
  %s76 = scalar_lea.vmem %s1, 152
  %s77 = scalar_lea.vmem %s0, 152
  %v78 = vld [vmem:[%s77] sm:$0xff]
  %79 = vst [vmem:[%s76] sm:$0xff] %v78
  %s80 = scalar_lea.vmem %s1, 160
  %s81 = scalar_lea.vmem %s0, 160
  %v82 = vld [vmem:[%s81] sm:$0xff]
  %83 = vst [vmem:[%s80] sm:$0xff] %v82
  %s84 = scalar_lea.vmem %s1, 168
  %s85 = scalar_lea.vmem %s0, 168
  %v86 = vld [vmem:[%s85] sm:$0xff]
  %87 = vst [vmem:[%s84] sm:$0xff] %v86
  %s88 = scalar_lea.vmem %s1, 176
  %s89 = scalar_lea.vmem %s0, 176
  %v90 = vld [vmem:[%s89] sm:$0xff]
  %91 = vst [vmem:[%s88] sm:$0xff] %v90
  %s92 = scalar_lea.vmem %s1, 184
  %s93 = scalar_lea.vmem %s0, 184
  %v94 = vld [vmem:[%s93] sm:$0xff]
  %95 = vst [vmem:[%s92] sm:$0xff] %v94
  %s96 = scalar_lea.vmem %s1, 192
  %s97 = scalar_lea.vmem %s0, 192
  %v98 = vld [vmem:[%s97] sm:$0xff]
  %99 = vst [vmem:[%s96] sm:$0xff] %v98
  %s100 = scalar_lea.vmem %s1, 200
  %s101 = scalar_lea.vmem %s0, 200
  %v102 = vld [vmem:[%s101] sm:$0xff]
  %103 = vst [vmem:[%s100] sm:$0xff] %v102
  %s104 = scalar_lea.vmem %s1, 208
  %s105 = scalar_lea.vmem %s0, 208
  %v106 = vld [vmem:[%s105] sm:$0xff]
  %107 = vst [vmem:[%s104] sm:$0xff] %v106
  %s108 = scalar_lea.vmem %s1, 216
  %s109 = scalar_lea.vmem %s0, 216
  %v110 = vld [vmem:[%s109] sm:$0xff]
  %111 = vst [vmem:[%s108] sm:$0xff] %v110
  %s112 = scalar_lea.vmem %s1, 224
  %s113 = scalar_lea.vmem %s0, 224
  %v114 = vld [vmem:[%s113] sm:$0xff]
  %115 = vst [vmem:[%s112] sm:$0xff] %v114
  %s116 = scalar_lea.vmem %s1, 232
  %s117 = scalar_lea.vmem %s0, 232
  %v118 = vld [vmem:[%s117] sm:$0xff]
  %119 = vst [vmem:[%s116] sm:$0xff] %v118
  %s120 = scalar_lea.vmem %s1, 240
  %s121 = scalar_lea.vmem %s0, 240
  %v122 = vld [vmem:[%s121] sm:$0xff]
  %123 = vst [vmem:[%s120] sm:$0xff] %v122
  %s124 = scalar_lea.vmem %s1, 248
  %s125 = scalar_lea.vmem %s0, 248
  %v126 = vld [vmem:[%s125] sm:$0xff]
  %127 = vst [vmem:[%s124] sm:$0xff] %v126
  %s128 = scalar_lea.vmem %s1, 256
  %s129 = scalar_lea.vmem %s0, 256
  %v130 = vld [vmem:[%s129] sm:$0xff]
  %131 = vst [vmem:[%s128] sm:$0xff] %v130
  %s132 = scalar_lea.vmem %s1, 264
  %s133 = scalar_lea.vmem %s0, 264
  %v134 = vld [vmem:[%s133] sm:$0xff]
  %135 = vst [vmem:[%s132] sm:$0xff] %v134
  %s136 = scalar_lea.vmem %s1, 272
  %s137 = scalar_lea.vmem %s0, 272
  %v138 = vld [vmem:[%s137] sm:$0xff]
  %139 = vst [vmem:[%s136] sm:$0xff] %v138
  %s140 = scalar_lea.vmem %s1, 280
  %s141 = scalar_lea.vmem %s0, 280
  %v142 = vld [vmem:[%s141] sm:$0xff]
  %143 = vst [vmem:[%s140] sm:$0xff] %v142
  %s144 = scalar_lea.vmem %s1, 288
  %s145 = scalar_lea.vmem %s0, 288
  %v146 = vld [vmem:[%s145] sm:$0xff]
  %147 = vst [vmem:[%s144] sm:$0xff] %v146
  %s148 = scalar_lea.vmem %s1, 296
  %s149 = scalar_lea.vmem %s0, 296
  %v150 = vld [vmem:[%s149] sm:$0xff]
  %151 = vst [vmem:[%s148] sm:$0xff] %v150
  %s152 = scalar_lea.vmem %s1, 304
  %s153 = scalar_lea.vmem %s0, 304
  %v154 = vld [vmem:[%s153] sm:$0xff]
  %155 = vst [vmem:[%s152] sm:$0xff] %v154
  %s156 = scalar_lea.vmem %s1, 312
  %s157 = scalar_lea.vmem %s0, 312
  %v158 = vld [vmem:[%s157] sm:$0xff]
  %159 = vst [vmem:[%s156] sm:$0xff] %v158
  %s160 = scalar_lea.vmem %s1, 320
  %s161 = scalar_lea.vmem %s0, 320
  %v162 = vld [vmem:[%s161] sm:$0xff]
  %163 = vst [vmem:[%s160] sm:$0xff] %v162
  %s164 = scalar_lea.vmem %s1, 328
  %s165 = scalar_lea.vmem %s0, 328
  %v166 = vld [vmem:[%s165] sm:$0xff]
  %167 = vst [vmem:[%s164] sm:$0xff] %v166
  %s168 = scalar_lea.vmem %s1, 336
  %s169 = scalar_lea.vmem %s0, 336
  %v170 = vld [vmem:[%s169] sm:$0xff]
  %171 = vst [vmem:[%s168] sm:$0xff] %v170
  %s172 = scalar_lea.vmem %s1, 344
  %s173 = scalar_lea.vmem %s0, 344
  %v174 = vld [vmem:[%s173] sm:$0xff]
  %175 = vst [vmem:[%s172] sm:$0xff] %v174
  %s176 = scalar_lea.vmem %s1, 352
  %s177 = scalar_lea.vmem %s0, 352
  %v178 = vld [vmem:[%s177] sm:$0xff]
  %179 = vst [vmem:[%s176] sm:$0xff] %v178
  %s180 = scalar_lea.vmem %s1, 360
  %s181 = scalar_lea.vmem %s0, 360
  %v182 = vld [vmem:[%s181] sm:$0xff]
  %183 = vst [vmem:[%s180] sm:$0xff] %v182
  %s184 = scalar_lea.vmem %s1, 368
  %s185 = scalar_lea.vmem %s0, 368
  %v186 = vld [vmem:[%s185] sm:$0xff]
  %187 = vst [vmem:[%s184] sm:$0xff] %v186
  %s188 = scalar_lea.vmem %s1, 376
  %s189 = scalar_lea.vmem %s0, 376
  %v190 = vld [vmem:[%s189] sm:$0xff]
  %191 = vst [vmem:[%s188] sm:$0xff] %v190
  %s192 = scalar_lea.vmem %s1, 384
  %s193 = scalar_lea.vmem %s0, 384
  %v194 = vld [vmem:[%s193] sm:$0xff]
  %195 = vst [vmem:[%s192] sm:$0xff] %v194
  %s196 = scalar_lea.vmem %s1, 392
  %s197 = scalar_lea.vmem %s0, 392
  %v198 = vld [vmem:[%s197] sm:$0xff]
  %199 = vst [vmem:[%s196] sm:$0xff] %v198
  %s200 = scalar_lea.vmem %s1, 400
  %s201 = scalar_lea.vmem %s0, 400
  %v202 = vld [vmem:[%s201] sm:$0xff]
  %203 = vst [vmem:[%s200] sm:$0xff] %v202
  %s204 = scalar_lea.vmem %s1, 408
  %s205 = scalar_lea.vmem %s0, 408
  %v206 = vld [vmem:[%s205] sm:$0xff]
  %207 = vst [vmem:[%s204] sm:$0xff] %v206
  %s208 = scalar_lea.vmem %s1, 416
  %s209 = scalar_lea.vmem %s0, 416
  %v210 = vld [vmem:[%s209] sm:$0xff]
  %211 = vst [vmem:[%s208] sm:$0xff] %v210
  %s212 = scalar_lea.vmem %s1, 424
  %s213 = scalar_lea.vmem %s0, 424
  %v214 = vld [vmem:[%s213] sm:$0xff]
  %215 = vst [vmem:[%s212] sm:$0xff] %v214
  %s216 = scalar_lea.vmem %s1, 432
  %s217 = scalar_lea.vmem %s0, 432
  %v218 = vld [vmem:[%s217] sm:$0xff]
  %219 = vst [vmem:[%s216] sm:$0xff] %v218
  %s220 = scalar_lea.vmem %s1, 440
  %s221 = scalar_lea.vmem %s0, 440
  %v222 = vld [vmem:[%s221] sm:$0xff]
  %223 = vst [vmem:[%s220] sm:$0xff] %v222
  %s224 = scalar_lea.vmem %s1, 448
  %s225 = scalar_lea.vmem %s0, 448
  %v226 = vld [vmem:[%s225] sm:$0xff]
  %227 = vst [vmem:[%s224] sm:$0xff] %v226
  %s228 = scalar_lea.vmem %s1, 456
  %s229 = scalar_lea.vmem %s0, 456
  %v230 = vld [vmem:[%s229] sm:$0xff]
  %231 = vst [vmem:[%s228] sm:$0xff] %v230
  %s232 = scalar_lea.vmem %s1, 464
  %s233 = scalar_lea.vmem %s0, 464
  %v234 = vld [vmem:[%s233] sm:$0xff]
  %235 = vst [vmem:[%s232] sm:$0xff] %v234
  %s236 = scalar_lea.vmem %s1, 472
  %s237 = scalar_lea.vmem %s0, 472
  %v238 = vld [vmem:[%s237] sm:$0xff]
  %239 = vst [vmem:[%s236] sm:$0xff] %v238
  %s240 = scalar_lea.vmem %s1, 480
  %s241 = scalar_lea.vmem %s0, 480
  %v242 = vld [vmem:[%s241] sm:$0xff]
  %243 = vst [vmem:[%s240] sm:$0xff] %v242
  %s244 = scalar_lea.vmem %s1, 488
  %s245 = scalar_lea.vmem %s0, 488
  %v246 = vld [vmem:[%s245] sm:$0xff]
  %247 = vst [vmem:[%s244] sm:$0xff] %v246
  %s248 = scalar_lea.vmem %s1, 496
  %s249 = scalar_lea.vmem %s0, 496
  %v250 = vld [vmem:[%s249] sm:$0xff]
  %251 = vst [vmem:[%s248] sm:$0xff] %v250
  %s252 = scalar_lea.vmem %s1, 504
  %s253 = scalar_lea.vmem %s0, 504
  %v254 = vld [vmem:[%s253] sm:$0xff]
  %255 = vst [vmem:[%s252] sm:$0xff] %v254

// kernel: _lambda_.1
$region0: #{_lambda_.1}
  #allocation0 [shape = 'u32[]', space=smem, size = 0x4, offset = 0x4, fixed_abs, tag = 'smem constant byte address 0x4 - core index']
  #allocation1 [shape = 'u32[72,128]{1,0:T(1,128)}', space=vmem, size = 0x9000, scoped, tag = 'internal scratch']
  %s0 = inlined_call_operand.vmem [shape: bf16[4,16,48], index: 0, kind: input, shape index: {}]
  %s1 = inlined_call_operand.vmem [shape: bf16[4,48,640], index: 1, kind: input, shape index: {}]
  %s2 = inlined_call_operand.vmem [shape: f32[4,16,640], index: 2, kind: output, shape index: {}]
  %s3 = sld [smem:[#allocation0]]
  $region41: #{_lambda_.1} parent=0
    _
  %s5 = ssub.s32 1, %s3
  %s6 = scalar_select 0, %s5, %s3
  loop: start=0, step=1, limit=6
  $region2: #{_lambda_.1} parent=0 // loop_pre_header
    _
  $region3: #{_lambda_.1} parent=0 // loop_header
    %s8 = sphi 0, %s12
    %p9 = scmp.ge.s32.totalorder %s8, 6
    %s15 = sphi 0, %s27
    %s16 = sphi 0, %s23
    %s17 = sphi 0, %s15
    %s18 = sphi 0, %s16
    %s19 = sphi 0, %s17
    %s20 = sphi 0, %s18
    %s30 = sphi 0, %s32
    %s33 = sphi 0, %s30
    %s34 = sphi 0, %s33
    %s50 = sphi 0, %s34
    %s58 = sphi 0, %s60
    %s61 = sphi 0, %s58
    %s62 = sphi 0, %s61
    %s78 = sphi 0, %s62
    %s86 = sphi 0, %s88
    %s89 = sphi 0, %s86
    %s90 = sphi 0, %s89
    %s106 = sphi 0, %s90
  $region4: #{_lambda_.1} parent=0 // loop_header_branch
    %11 = sbr.rel (%p9) target = $region8
  $region5: #{_lambda_.1} parent=0 // loop_body
    %s13 = ssub.s32 %s8, 1
    %s14 = ssub.s32 %s8, 2
    %s21 = sadd.s32 1, %s16
    %p22 = scmp.ge.s32.totalorder %s21, 1
    %s23 = scalar_select %p22, 0, %s21
    %s24 = sadd.s32 1, %s15
    %s25 = scalar_select %p22, %s24, %s15
    %p26 = scmp.ge.s32.totalorder %s25, 4
    %s27 = scalar_select %p26, 0, %s25
    %s28 = ssub.s32 %s15, %s27
    %p29 = scmp.eq.s32.totalorder %s28, 0
    %s31 = sadd.s32 %s30, 1
    %s32 = scalar_select %p29, %s30, %s31
    %p35 = pneg %p29
    %p36 = scmp.eq.s32.totalorder %s8, 3
    %p37 = por %p35, %p36
    %p38 = scmp.ne.s32.totalorder %s30, %s33
    %p39 = scmp.eq.s32.totalorder %s8, 0
    %p40 = por %p38, %p39
    %p41 = scmp.ne.s32.totalorder %s30, %s33
    %p42 = scmp.eq.s32.totalorder %s13, 3
    %p43 = por %p41, %p42
    %p44 = scmp.ne.s32.totalorder %s33, %s34
    %p45 = scmp.eq.s32.totalorder %s13, 0
    %p46 = por %p44, %p45
    %p47 = scmp.ne.s32.totalorder %s33, %s34
    %p48 = scmp.eq.s32.totalorder %s14, 3
    %p49 = por %p47, %p48
    %p51 = scmp.ne.s32.totalorder %s34, %s50
    %p52 = scmp.eq.s32.totalorder %s14, 0
    %p53 = por %p51, %p52
    %s54 = ssub.s32 %s15, %s27
    %s55 = ssub.s32 %s16, %s23
    %s56 = sor.u32 %s54, %s55
    %p57 = scmp.eq.s32.totalorder %s56, 0
    %s59 = sadd.s32 %s58, 1
    %s60 = scalar_select %p57, %s58, %s59
    %p63 = pneg %p57
    %p64 = scmp.eq.s32.totalorder %s8, 3
    %p65 = por %p63, %p64
    %p66 = scmp.ne.s32.totalorder %s58, %s61
    %p67 = scmp.eq.s32.totalorder %s8, 0
    %p68 = por %p66, %p67
    %p69 = scmp.ne.s32.totalorder %s58, %s61
    %p70 = scmp.eq.s32.totalorder %s13, 3
    %p71 = por %p69, %p70
    %p72 = scmp.ne.s32.totalorder %s61, %s62
    %p73 = scmp.eq.s32.totalorder %s13, 0
    %p74 = por %p72, %p73
    %p75 = scmp.ne.s32.totalorder %s61, %s62
    %p76 = scmp.eq.s32.totalorder %s14, 3
    %p77 = por %p75, %p76
    %p79 = scmp.ne.s32.totalorder %s62, %s78
    %p80 = scmp.eq.s32.totalorder %s14, 0
    %p81 = por %p79, %p80
    %s82 = ssub.s32 %s15, %s27
    %s83 = ssub.s32 %s16, %s23
    %s84 = sor.u32 %s82, %s83
    %p85 = scmp.eq.s32.totalorder %s84, 0
    %s87 = sadd.s32 %s86, 1
    %s88 = scalar_select %p85, %s86, %s87
    %p91 = pneg %p85
    %p92 = scmp.eq.s32.totalorder %s8, 3
    %p93 = por %p91, %p92
    %p94 = scmp.ne.s32.totalorder %s86, %s89
    %p95 = scmp.eq.s32.totalorder %s8, 0
    %p96 = por %p94, %p95
    %p97 = scmp.ne.s32.totalorder %s86, %s89
    %p98 = scmp.eq.s32.totalorder %s13, 3
    %p99 = por %p97, %p98
    %p100 = scmp.ne.s32.totalorder %s89, %s90
    %p101 = scmp.eq.s32.totalorder %s13, 0
    %p102 = por %p100, %p101
    %p103 = scmp.ne.s32.totalorder %s89, %s90
    %p104 = scmp.eq.s32.totalorder %s14, 3
    %p105 = por %p103, %p104
    %p107 = scmp.ne.s32.totalorder %s90, %s106
    %p108 = scmp.eq.s32.totalorder %s14, 0
    %p109 = por %p107, %p108
    %p110 = scmp.le.s32.totalorder 1, %s8
    %p111 = scmp.lt.s32.totalorder %s8, 5
    %p112 = pnand %p110, %p111
    %p113 = pneg %p112
    // Predicated region
    $region9: #{_lambda_.1} parent=5 // pred_check
      _
    $region10: #{_lambda_.1} parent=5 // pred_check_branch
      %115 = sbr.rel (%p112) target = $region12
    $region11: #{_lambda_.1} parent=5 // pred_region
      %s116 = ssub.s32 %s8, 1
    $region12: #{_lambda_.1} parent=5 // pred_fallthru
      _
    %p117 = scmp.lt.s32.totalorder %s8, 4
    // Predicated region
    $region13: #{_lambda_.1} parent=5 // pred_check
      %p118 = pneg %p117
    $region14: #{_lambda_.1} parent=5 // pred_check_branch
      %120 = sbr.rel (%p118) target = $region16
    $region15: #{_lambda_.1} parent=5 // pred_region
      // Predicated region
      $region17: #{_lambda_.1} parent=15 // pred_check
        %p121 = pneg %p40
      $region18: #{_lambda_.1} parent=15 // pred_check_branch
        %123 = sbr.rel (%p121) target = $region20
      $region19: #{_lambda_.1} parent=15 // pred_region
        %p124 = scmp.lt.s32.totalorder %s15, 3
        %s125 = scalar_select %p124, %s15, 3
        %s126 = smul.addr %s125, 2
        %s127 = smul.addr %s126, 4
        %s128 = scalar_lea.vmem %s0, %s127
      $region20: #{_lambda_.1} parent=15 // pred_fallthru
        _
      // Predicated region
      $region21: #{_lambda_.1} parent=15 // pred_check
        %p129 = pneg %p68
      $region22: #{_lambda_.1} parent=15 // pred_check_branch
        %131 = sbr.rel (%p129) target = $region24
      $region23: #{_lambda_.1} parent=15 // pred_region
        %s132 = smul.u32 5, %s16
        %p133 = scmp.lt.s32.totalorder %s15, 3
        %s134 = scalar_select %p133, %s15, 3
        %p135 = scmp.lt.s32.totalorder %s132, 4
        %s136 = scalar_select %p135, %s132, 4
        %s137 = smul.addr %s134, 30
        %s138 = sadd.s32 %s136, %s137
        %s139 = smul.addr %s138, 4
        %s140 = scalar_lea.vmem %s1, %s139
        %s141 = smul.u32 5, %s16
      $region24: #{_lambda_.1} parent=15 // pred_fallthru
        _
    $region16: #{_lambda_.1} parent=5 // pred_fallthru
      _
    %p142 = scmp.le.s32.totalorder 1, %s8
    %p143 = scmp.lt.s32.totalorder %s8, 5
    %p144 = pnand %p142, %p143
    %p145 = pneg %p144
    // Predicated region
    $region25: #{_lambda_.1} parent=5 // pred_check
      _
    $region26: #{_lambda_.1} parent=5 // pred_check_branch
      %147 = sbr.rel (%p144) target = $region28
    $region27: #{_lambda_.1} parent=5 // pred_region
      %s148 = ssub.s32 %s8, 1
      %p149 = scmp.lt.s32.totalorder %s17, 3
      %s150 = scalar_select %p149, %s17, 3
      %s151 = smul.addr %s150, 2
      %s152 = smul.addr %s151, 4
      %s153 = scalar_lea.vmem %s0, %s152
      %p154 = pneg %p46
      %p155 = pneg %p43
      %s156 = smul.u32 5, %s18
      %p157 = scmp.lt.s32.totalorder %s17, 3
      %s158 = scalar_select %p157, %s17, 3
      %p159 = scmp.lt.s32.totalorder %s156, 4
      %s160 = scalar_select %p159, %s156, 4
      %s161 = smul.addr %s158, 30
      %s162 = sadd.s32 %s160, %s161
      %s163 = smul.addr %s162, 4
      %s164 = scalar_lea.vmem %s1, %s163
      %p165 = pneg %p74
      %p166 = pneg %p71
      %p167 = pneg %p102
      %p168 = pneg %p99
      %s169 = smul.u32 5, %s18
      %p170 = scmp.lt.s32.totalorder %s17, 3
      %s171 = scalar_select %p170, %s17, 3
      %p172 = scmp.lt.s32.totalorder %s169, 4
      %s173 = scalar_select %p172, %s169, 4
      %s174 = smul.addr %s171, 10
      %s175 = sadd.s32 %s173, %s174
      %s176 = smul.addr %s175, 8
      %s177 = scalar_lea.vmem %s2, %s176
      %p178 = scmp.lt.s32.totalorder %s17, 3
      %s179 = scalar_select %p178, %s17, 3
      %s180 = smul.addr %s179, 2
      %s181 = smul.addr %s180, 4
      %s182 = scalar_lea.vmem %s0, %s181
      %s183 = smul.u32 5, %s18
      %p184 = scmp.lt.s32.totalorder %s17, 3
      %s185 = scalar_select %p184, %s17, 3
      %p186 = scmp.lt.s32.totalorder %s183, 4
      %s187 = scalar_select %p186, %s183, 4
      %s188 = smul.addr %s185, 30
      %s189 = sadd.s32 %s187, %s188
      %s190 = smul.addr %s189, 4
      %s191 = scalar_lea.vmem %s1, %s190
      %s192 = smul.u32 5, %s18
      %s193 = smul.u32 5, %s18
      %p194 = scmp.lt.s32.totalorder %s17, 3
      %s195 = scalar_select %p194, %s17, 3
      %p196 = scmp.lt.s32.totalorder %s193, 4
      %s197 = scalar_select %p196, %s193, 4
      %s198 = smul.addr %s195, 10
      %s199 = sadd.s32 %s197, %s198
      %s200 = smul.addr %s199, 8
      %s201 = scalar_lea.vmem %s2, %s200
      %s202 = smul.u32 5, %s18
      %v204 = vld [vmem:[%s182] sm:$0xf]
      %v205 = vld [vmem:[%s182 + $0x4] sm:$0xf]
      %v206 = vld [vmem:[%s191] sm:$0xff]
      %v207 = vld [vmem:[%s191 + $0x8] sm:$0xff]
      %v208 = vld [vmem:[%s191 + $0x10] sm:$0xf]
      %v209 = vld [vmem:[%s191 + $0x14] sm:$0xff]
      %v210 = vld [vmem:[%s191 + $0x1c] sm:$0xff]
      %v211 = vld [vmem:[%s191 + $0x24] sm:$0xf]
      %v212 = vld [vmem:[%s191 + $0x28] sm:$0xff]
      %v213 = vld [vmem:[%s191 + $0x30] sm:$0xff]
      %v214 = vld [vmem:[%s191 + $0x38] sm:$0xf]
      %v215 = vld [vmem:[%s191 + $0x3c] sm:$0xff]
      %v216 = vld [vmem:[%s191 + $0x44] sm:$0xff]
      %v217 = vld [vmem:[%s191 + $0x4c] sm:$0xf]
      %v218 = vld [vmem:[%s191 + $0x50] sm:$0xff]
      %v219 = vld [vmem:[%s191 + $0x58] sm:$0xff]
      %v220 = vld [vmem:[%s191 + $0x60] sm:$0xf]
      %v221 = vld [vmem:[%s191 + $0x64] sm:$0xff]
      %v222 = vld [vmem:[%s191 + $0x6c] sm:$0xff]
      %v223 = vld [vmem:[%s191 + $0x74] sm:$0xf]
      %v226 = vunpack.c.l.b16 %v204
      %v227 = vunpack.c.l.b16 %v205
      %v228 = vpack.c.b16 %v227, %v226
      %v247 = vunpack.c.l.b16 %v206
      %v248 = vunpack.c.h.b16 %v206
      %v249 = vunpack.c.l.b16 %v207
      %v250 = vunpack.c.h.b16 %v207
      %v251 = vunpack.c.l.b16 %v208
      %v252 = vunpack.c.l.b16 %v209
      %v253 = vunpack.c.h.b16 %v209
      %v254 = vunpack.c.l.b16 %v210
      %v255 = vunpack.c.h.b16 %v210
      %v256 = vunpack.c.l.b16 %v211
      %v257 = vunpack.c.l.b16 %v212
      %v258 = vunpack.c.h.b16 %v212
      %v259 = vunpack.c.l.b16 %v213
      %v260 = vunpack.c.h.b16 %v213
      %v261 = vunpack.c.l.b16 %v214
      %v262 = vunpack.c.l.b16 %v215
      %v263 = vunpack.c.h.b16 %v215
      %v264 = vunpack.c.l.b16 %v216
      %v265 = vunpack.c.h.b16 %v216
      %v266 = vunpack.c.l.b16 %v217
      %v267 = vunpack.c.l.b16 %v218
      %v268 = vunpack.c.h.b16 %v218
      %v269 = vunpack.c.l.b16 %v219
      %v270 = vunpack.c.h.b16 %v219
      %v271 = vunpack.c.l.b16 %v220
      %v272 = vunpack.c.l.b16 %v221
      %v273 = vunpack.c.h.b16 %v221
      %v274 = vunpack.c.l.b16 %v222
      %v275 = vunpack.c.h.b16 %v222
      %v276 = vunpack.c.l.b16 %v223
      %v277 = vpack.c.b16 %v252, %v247
      %v278 = vpack.c.b16 %v253, %v248
      %v279 = vpack.c.b16 %v254, %v249
      %v280 = vpack.c.b16 %v255, %v250
      %v281 = vpack.c.b16 %v256, %v251
      %v282 = vpack.c.b16 %v262, %v257
      %v283 = vpack.c.b16 %v263, %v258
      %v284 = vpack.c.b16 %v264, %v259
      %v285 = vpack.c.b16 %v265, %v260
      %v286 = vpack.c.b16 %v266, %v261
      %v287 = vpack.c.b16 %v272, %v267
      %v288 = vpack.c.b16 %v273, %v268
      %v289 = vpack.c.b16 %v274, %v269
      %v290 = vpack.c.b16 %v275, %v270
      %v291 = vpack.c.b16 %v276, %v271
      %vm307 = vcmask 392192
      %v309 = vsel %vm307, %v228, 0
      %311 = vmatpush.bf16.msra.mxu0 0
      %312 = vmatpush.bf16.msra.mxu0 0
      %313 = vmatpush.bf16.msra.mxu0 0
      %314 = vmatpush.bf16.msra.mxu0 0
      %315 = vmatpush.bf16.msra.mxu0 0
      %316 = vmatpush.bf16.msra.mxu0 %v287
      %317 = vmatpush.bf16.msra.mxu0 %v282
      %318 = vmatpush.bf16.msra.mxu0 %v277
      %319 = vmatmul.bf16.gmra.mxu0 %v309
      %v320 = vpop.f32.mrf.mxu0
      %v321 = vadd.f32 0.0, %v320
      %v322 = vpop.f32.mrf.mxu0
      %v323 = vadd.f32 0.0, %v322
      %324 = vdwg.mxu0
      %325 = vmatpush.bf16.msra.mxu0 0
      %326 = vmatpush.bf16.msra.mxu0 0
      %327 = vmatpush.bf16.msra.mxu0 0
      %328 = vmatpush.bf16.msra.mxu0 0
      %329 = vmatpush.bf16.msra.mxu0 0
      %330 = vmatpush.bf16.msra.mxu0 %v288
      %331 = vmatpush.bf16.msra.mxu0 %v283
      %332 = vmatpush.bf16.msra.mxu0 %v278
      %333 = vmatmul.bf16.gmra.mxu0 %v309
      %v334 = vpop.f32.mrf.mxu0
      %v335 = vadd.f32 0.0, %v334
      %v336 = vpop.f32.mrf.mxu0
      %v337 = vadd.f32 0.0, %v336
      %338 = vdwg.mxu0
      %339 = vmatpush.bf16.msra.mxu0 0
      %340 = vmatpush.bf16.msra.mxu0 0
      %341 = vmatpush.bf16.msra.mxu0 0
      %342 = vmatpush.bf16.msra.mxu0 0
      %343 = vmatpush.bf16.msra.mxu0 0
      %344 = vmatpush.bf16.msra.mxu0 %v289
      %345 = vmatpush.bf16.msra.mxu0 %v284
      %346 = vmatpush.bf16.msra.mxu0 %v279
      %347 = vmatmul.bf16.gmra.mxu0 %v309
      %v348 = vpop.f32.mrf.mxu0
      %v349 = vadd.f32 0.0, %v348
      %v350 = vpop.f32.mrf.mxu0
      %v351 = vadd.f32 0.0, %v350
      %352 = vdwg.mxu0
      %353 = vmatpush.bf16.msra.mxu0 0
      %354 = vmatpush.bf16.msra.mxu0 0
      %355 = vmatpush.bf16.msra.mxu0 0
      %356 = vmatpush.bf16.msra.mxu0 0
      %357 = vmatpush.bf16.msra.mxu0 0
      %358 = vmatpush.bf16.msra.mxu0 %v290
      %359 = vmatpush.bf16.msra.mxu0 %v285
      %360 = vmatpush.bf16.msra.mxu0 %v280
      %361 = vmatmul.bf16.gmra.mxu0 %v309
      %v362 = vpop.f32.mrf.mxu0
      %v363 = vadd.f32 0.0, %v362
      %v364 = vpop.f32.mrf.mxu0
      %v365 = vadd.f32 0.0, %v364
      %366 = vdwg.mxu0
      %367 = vmatpush.bf16.msra.mxu0 0
      %368 = vmatpush.bf16.msra.mxu0 0
      %369 = vmatpush.bf16.msra.mxu0 0
      %370 = vmatpush.bf16.msra.mxu0 0
      %371 = vmatpush.bf16.msra.mxu0 0
      %372 = vmatpush.bf16.msra.mxu0 %v291
      %373 = vmatpush.bf16.msra.mxu0 %v286
      %374 = vmatpush.bf16.msra.mxu0 %v281
      %375 = vmatmul.bf16.gmra.mxu0 %v309
      %v376 = vpop.f32.mrf.mxu0
      %v377 = vadd.f32 0.0, %v376
      %v378 = vpop.f32.mrf.mxu0
      %v379 = vadd.f32 0.0, %v378
      %380 = vdwg.mxu0
      %381 = vst [vmem:[%s201] sm:$0xff] %v321
      %382 = vst [vmem:[%s201 + $0x8] sm:$0xff] %v335
      %383 = vst [vmem:[%s201 + $0x10] sm:$0xff] %v349
      %384 = vst [vmem:[%s201 + $0x18] sm:$0xff] %v363
      %385 = vst [vmem:[%s201 + $0x20] sm:$0xff] %v377
      %386 = vst [vmem:[%s201 + $0x28] sm:$0xff] %v323
      %387 = vst [vmem:[%s201 + $0x30] sm:$0xff] %v337
      %388 = vst [vmem:[%s201 + $0x38] sm:$0xff] %v351
      %389 = vst [vmem:[%s201 + $0x40] sm:$0xff] %v365
      %390 = vst [vmem:[%s201 + $0x48] sm:$0xff] %v379
      %s391 = smul.u32 5, %s18
      %p392 = scmp.lt.s32.totalorder %s17, 3
      %s393 = scalar_select %p392, %s17, 3
      %p394 = scmp.lt.s32.totalorder %s391, 4
      %s395 = scalar_select %p394, %s391, 4
      %s396 = smul.addr %s393, 10
      %s397 = sadd.s32 %s395, %s396
      %s398 = smul.addr %s397, 8
      %s399 = scalar_lea.vmem %s2, %s398
      // Predicated region
      $region29: #{_lambda_.1} parent=27 // pred_check
        %p400 = pneg %p99
      $region30: #{_lambda_.1} parent=27 // pred_check_branch
        %402 = sbr.rel (%p400) target = $region32
      $region31: #{_lambda_.1} parent=27 // pred_region
        %s403 = smul.u32 5, %s18
      $region32: #{_lambda_.1} parent=27 // pred_fallthru
        _
    $region28: #{_lambda_.1} parent=5 // pred_fallthru
      _
    %p404 = scmp.le.s32.totalorder 2, %s8
    // Predicated region
    $region33: #{_lambda_.1} parent=5 // pred_check
      %p405 = pneg %p404
    $region34: #{_lambda_.1} parent=5 // pred_check_branch
      %407 = sbr.rel (%p405) target = $region36
    $region35: #{_lambda_.1} parent=5 // pred_region
      %s408 = ssub.s32 %s8, 2
      // Predicated region
      $region37: #{_lambda_.1} parent=35 // pred_check
        %p409 = pneg %p105
      $region38: #{_lambda_.1} parent=35 // pred_check_branch
        %411 = sbr.rel (%p409) target = $region40
      $region39: #{_lambda_.1} parent=35 // pred_region
        %s412 = smul.u32 5, %s20
        %p413 = scmp.lt.s32.totalorder %s19, 3
        %s414 = scalar_select %p413, %s19, 3
        %p415 = scmp.lt.s32.totalorder %s412, 4
        %s416 = scalar_select %p415, %s412, 4
        %s417 = smul.addr %s414, 10
        %s418 = sadd.s32 %s416, %s417
        %s419 = smul.addr %s418, 8
        %s420 = scalar_lea.vmem %s2, %s419
      $region40: #{_lambda_.1} parent=35 // pred_fallthru
        _
    $region36: #{_lambda_.1} parent=5 // pred_fallthru
      _
  $region6: #{_lambda_.1} parent=0 // loop_footer
    %s12 = sadd.s32 1, %s8
  $region7: #{_lambda_.1} parent=0 // loop_footer_branch
    %7 = sbr.rel target = $region3
  $region8: #{_lambda_.1} parent=0 // loop_exit
    _

// kernel: custom-call.2
$region0: #{custom-call.2}
  %s0 = inlined_call_operand.vmem [shape: f32[2,8,32,32], index: 0, kind: input, shape index: {}]
  %s1 = inlined_call_operand.vmem [shape: f32[2,8,32,32], index: 1, kind: input, shape index: {}]
  %s2 = inlined_call_operand.vmem [shape: c64[2,8,32,32], index: 2, kind: output, shape index: {}]
  %s3 = scalar_lea.vmem %s2, 2048
  %v4 = vld [vmem:[%s0] sm:$0xff]
  %5 = vst [vmem:[%s2] sm:$0xff] %v4
  %s6 = scalar_lea.vmem %s2, 8
  %s7 = scalar_lea.vmem %s0, 8
  %v8 = vld [vmem:[%s7] sm:$0xff]
  %9 = vst [vmem:[%s6] sm:$0xff] %v8
  %s10 = scalar_lea.vmem %s2, 16
  %s11 = scalar_lea.vmem %s0, 16
  %v12 = vld [vmem:[%s11] sm:$0xff]
  %13 = vst [vmem:[%s10] sm:$0xff] %v12
  %s14 = scalar_lea.vmem %s2, 24
  %s15 = scalar_lea.vmem %s0, 24
  %v16 = vld [vmem:[%s15] sm:$0xff]
  %17 = vst [vmem:[%s14] sm:$0xff] %v16
  %s18 = scalar_lea.vmem %s2, 32
  %s19 = scalar_lea.vmem %s0, 32
  %v20 = vld [vmem:[%s19] sm:$0xff]
  %21 = vst [vmem:[%s18] sm:$0xff] %v20
  %s22 = scalar_lea.vmem %s2, 40
  %s23 = scalar_lea.vmem %s0, 40
  %v24 = vld [vmem:[%s23] sm:$0xff]
  %25 = vst [vmem:[%s22] sm:$0xff] %v24
  %s26 = scalar_lea.vmem %s2, 48
  %s27 = scalar_lea.vmem %s0, 48
  %v28 = vld [vmem:[%s27] sm:$0xff]
  %29 = vst [vmem:[%s26] sm:$0xff] %v28
  %s30 = scalar_lea.vmem %s2, 56
  %s31 = scalar_lea.vmem %s0, 56
  %v32 = vld [vmem:[%s31] sm:$0xff]
  %33 = vst [vmem:[%s30] sm:$0xff] %v32
  %s34 = scalar_lea.vmem %s2, 64
  %s35 = scalar_lea.vmem %s0, 64
  %v36 = vld [vmem:[%s35] sm:$0xff]
  %37 = vst [vmem:[%s34] sm:$0xff] %v36
  %s38 = scalar_lea.vmem %s2, 72
  %s39 = scalar_lea.vmem %s0, 72
  %v40 = vld [vmem:[%s39] sm:$0xff]
  %41 = vst [vmem:[%s38] sm:$0xff] %v40
  %s42 = scalar_lea.vmem %s2, 80
  %s43 = scalar_lea.vmem %s0, 80
  %v44 = vld [vmem:[%s43] sm:$0xff]
  %45 = vst [vmem:[%s42] sm:$0xff] %v44
  %s46 = scalar_lea.vmem %s2, 88
  %s47 = scalar_lea.vmem %s0, 88
  %v48 = vld [vmem:[%s47] sm:$0xff]
  %49 = vst [vmem:[%s46] sm:$0xff] %v48
  %s50 = scalar_lea.vmem %s2, 96
  %s51 = scalar_lea.vmem %s0, 96
  %v52 = vld [vmem:[%s51] sm:$0xff]
  %53 = vst [vmem:[%s50] sm:$0xff] %v52
  %s54 = scalar_lea.vmem %s2, 104
  %s55 = scalar_lea.vmem %s0, 104
  %v56 = vld [vmem:[%s55] sm:$0xff]
  %57 = vst [vmem:[%s54] sm:$0xff] %v56
  %s58 = scalar_lea.vmem %s2, 112
  %s59 = scalar_lea.vmem %s0, 112
  %v60 = vld [vmem:[%s59] sm:$0xff]
  %61 = vst [vmem:[%s58] sm:$0xff] %v60
  %s62 = scalar_lea.vmem %s2, 120
  %s63 = scalar_lea.vmem %s0, 120
  %v64 = vld [vmem:[%s63] sm:$0xff]
  %65 = vst [vmem:[%s62] sm:$0xff] %v64
  %s66 = scalar_lea.vmem %s2, 128
  %s67 = scalar_lea.vmem %s0, 128
  %v68 = vld [vmem:[%s67] sm:$0xff]
  %69 = vst [vmem:[%s66] sm:$0xff] %v68
  %s70 = scalar_lea.vmem %s2, 136
  %s71 = scalar_lea.vmem %s0, 136
  %v72 = vld [vmem:[%s71] sm:$0xff]
  %73 = vst [vmem:[%s70] sm:$0xff] %v72
  %s74 = scalar_lea.vmem %s2, 144
  %s75 = scalar_lea.vmem %s0, 144
  %v76 = vld [vmem:[%s75] sm:$0xff]
  %77 = vst [vmem:[%s74] sm:$0xff] %v76
  %s78 = scalar_lea.vmem %s2, 152
  %s79 = scalar_lea.vmem %s0, 152
  %v80 = vld [vmem:[%s79] sm:$0xff]
  %81 = vst [vmem:[%s78] sm:$0xff] %v80
  %s82 = scalar_lea.vmem %s2, 160
  %s83 = scalar_lea.vmem %s0, 160
  %v84 = vld [vmem:[%s83] sm:$0xff]
  %85 = vst [vmem:[%s82] sm:$0xff] %v84
  %s86 = scalar_lea.vmem %s2, 168
  %s87 = scalar_lea.vmem %s0, 168
  %v88 = vld [vmem:[%s87] sm:$0xff]
  %89 = vst [vmem:[%s86] sm:$0xff] %v88
  %s90 = scalar_lea.vmem %s2, 176
  %s91 = scalar_lea.vmem %s0, 176
  %v92 = vld [vmem:[%s91] sm:$0xff]
  %93 = vst [vmem:[%s90] sm:$0xff] %v92
  %s94 = scalar_lea.vmem %s2, 184
  %s95 = scalar_lea.vmem %s0, 184
  %v96 = vld [vmem:[%s95] sm:$0xff]
  %97 = vst [vmem:[%s94] sm:$0xff] %v96
  %s98 = scalar_lea.vmem %s2, 192
  %s99 = scalar_lea.vmem %s0, 192
  %v100 = vld [vmem:[%s99] sm:$0xff]
  %101 = vst [vmem:[%s98] sm:$0xff] %v100
  %s102 = scalar_lea.vmem %s2, 200
  %s103 = scalar_lea.vmem %s0, 200
  %v104 = vld [vmem:[%s103] sm:$0xff]
  %105 = vst [vmem:[%s102] sm:$0xff] %v104
  %s106 = scalar_lea.vmem %s2, 208
  %s107 = scalar_lea.vmem %s0, 208
  %v108 = vld [vmem:[%s107] sm:$0xff]
  %109 = vst [vmem:[%s106] sm:$0xff] %v108
  %s110 = scalar_lea.vmem %s2, 216
  %s111 = scalar_lea.vmem %s0, 216
  %v112 = vld [vmem:[%s111] sm:$0xff]
  %113 = vst [vmem:[%s110] sm:$0xff] %v112
  %s114 = scalar_lea.vmem %s2, 224
  %s115 = scalar_lea.vmem %s0, 224
  %v116 = vld [vmem:[%s115] sm:$0xff]
  %117 = vst [vmem:[%s114] sm:$0xff] %v116
  %s118 = scalar_lea.vmem %s2, 232
  %s119 = scalar_lea.vmem %s0, 232
  %v120 = vld [vmem:[%s119] sm:$0xff]
  %121 = vst [vmem:[%s118] sm:$0xff] %v120
  %s122 = scalar_lea.vmem %s2, 240
  %s123 = scalar_lea.vmem %s0, 240
  %v124 = vld [vmem:[%s123] sm:$0xff]
  %125 = vst [vmem:[%s122] sm:$0xff] %v124
  %s126 = scalar_lea.vmem %s2, 248
  %s127 = scalar_lea.vmem %s0, 248
  %v128 = vld [vmem:[%s127] sm:$0xff]
  %129 = vst [vmem:[%s126] sm:$0xff] %v128
  %s130 = scalar_lea.vmem %s2, 256
  %s131 = scalar_lea.vmem %s0, 256
  %v132 = vld [vmem:[%s131] sm:$0xff]
  %133 = vst [vmem:[%s130] sm:$0xff] %v132
  %s134 = scalar_lea.vmem %s2, 264
  %s135 = scalar_lea.vmem %s0, 264
  %v136 = vld [vmem:[%s135] sm:$0xff]
  %137 = vst [vmem:[%s134] sm:$0xff] %v136
  %s138 = scalar_lea.vmem %s2, 272
  %s139 = scalar_lea.vmem %s0, 272
  %v140 = vld [vmem:[%s139] sm:$0xff]
  %141 = vst [vmem:[%s138] sm:$0xff] %v140
  %s142 = scalar_lea.vmem %s2, 280
  %s143 = scalar_lea.vmem %s0, 280
  %v144 = vld [vmem:[%s143] sm:$0xff]
  %145 = vst [vmem:[%s142] sm:$0xff] %v144
  %s146 = scalar_lea.vmem %s2, 288
  %s147 = scalar_lea.vmem %s0, 288
  %v148 = vld [vmem:[%s147] sm:$0xff]
  %149 = vst [vmem:[%s146] sm:$0xff] %v148
  %s150 = scalar_lea.vmem %s2, 296
  %s151 = scalar_lea.vmem %s0, 296
  %v152 = vld [vmem:[%s151] sm:$0xff]
  %153 = vst [vmem:[%s150] sm:$0xff] %v152
  %s154 = scalar_lea.vmem %s2, 304
  %s155 = scalar_lea.vmem %s0, 304
  %v156 = vld [vmem:[%s155] sm:$0xff]
  %157 = vst [vmem:[%s154] sm:$0xff] %v156
  %s158 = scalar_lea.vmem %s2, 312
  %s159 = scalar_lea.vmem %s0, 312
  %v160 = vld [vmem:[%s159] sm:$0xff]
  %161 = vst [vmem:[%s158] sm:$0xff] %v160
  %s162 = scalar_lea.vmem %s2, 320
  %s163 = scalar_lea.vmem %s0, 320
  %v164 = vld [vmem:[%s163] sm:$0xff]
  %165 = vst [vmem:[%s162] sm:$0xff] %v164
  %s166 = scalar_lea.vmem %s2, 328
  %s167 = scalar_lea.vmem %s0, 328
  %v168 = vld [vmem:[%s167] sm:$0xff]
  %169 = vst [vmem:[%s166] sm:$0xff] %v168
  %s170 = scalar_lea.vmem %s2, 336
  %s171 = scalar_lea.vmem %s0, 336
  %v172 = vld [vmem:[%s171] sm:$0xff]
  %173 = vst [vmem:[%s170] sm:$0xff] %v172
  %s174 = scalar_lea.vmem %s2, 344
  %s175 = scalar_lea.vmem %s0, 344
  %v176 = vld [vmem:[%s175] sm:$0xff]
  %177 = vst [vmem:[%s174] sm:$0xff] %v176
  %s178 = scalar_lea.vmem %s2, 352
  %s179 = scalar_lea.vmem %s0, 352
  %v180 = vld [vmem:[%s179] sm:$0xff]
  %181 = vst [vmem:[%s178] sm:$0xff] %v180
  %s182 = scalar_lea.vmem %s2, 360
  %s183 = scalar_lea.vmem %s0, 360
  %v184 = vld [vmem:[%s183] sm:$0xff]
  %185 = vst [vmem:[%s182] sm:$0xff] %v184
  %s186 = scalar_lea.vmem %s2, 368
  %s187 = scalar_lea.vmem %s0, 368
  %v188 = vld [vmem:[%s187] sm:$0xff]
  %189 = vst [vmem:[%s186] sm:$0xff] %v188
  %s190 = scalar_lea.vmem %s2, 376
  %s191 = scalar_lea.vmem %s0, 376
  %v192 = vld [vmem:[%s191] sm:$0xff]
  %193 = vst [vmem:[%s190] sm:$0xff] %v192
  %s194 = scalar_lea.vmem %s2, 384
  %s195 = scalar_lea.vmem %s0, 384
  %v196 = vld [vmem:[%s195] sm:$0xff]
  %197 = vst [vmem:[%s194] sm:$0xff] %v196
  %s198 = scalar_lea.vmem %s2, 392
  %s199 = scalar_lea.vmem %s0, 392
  %v200 = vld [vmem:[%s199] sm:$0xff]
  %201 = vst [vmem:[%s198] sm:$0xff] %v200
  %s202 = scalar_lea.vmem %s2, 400
  %s203 = scalar_lea.vmem %s0, 400
  %v204 = vld [vmem:[%s203] sm:$0xff]
  %205 = vst [vmem:[%s202] sm:$0xff] %v204
  %s206 = scalar_lea.vmem %s2, 408
  %s207 = scalar_lea.vmem %s0, 408
  %v208 = vld [vmem:[%s207] sm:$0xff]
  %209 = vst [vmem:[%s206] sm:$0xff] %v208
  %s210 = scalar_lea.vmem %s2, 416
  %s211 = scalar_lea.vmem %s0, 416
  %v212 = vld [vmem:[%s211] sm:$0xff]
  %213 = vst [vmem:[%s210] sm:$0xff] %v212
  %s214 = scalar_lea.vmem %s2, 424
  %s215 = scalar_lea.vmem %s0, 424
  %v216 = vld [vmem:[%s215] sm:$0xff]
  %217 = vst [vmem:[%s214] sm:$0xff] %v216
  %s218 = scalar_lea.vmem %s2, 432
  %s219 = scalar_lea.vmem %s0, 432
  %v220 = vld [vmem:[%s219] sm:$0xff]
  %221 = vst [vmem:[%s218] sm:$0xff] %v220
  %s222 = scalar_lea.vmem %s2, 440
  %s223 = scalar_lea.vmem %s0, 440
  %v224 = vld [vmem:[%s223] sm:$0xff]
  %225 = vst [vmem:[%s222] sm:$0xff] %v224
  %s226 = scalar_lea.vmem %s2, 448
  %s227 = scalar_lea.vmem %s0, 448
  %v228 = vld [vmem:[%s227] sm:$0xff]
  %229 = vst [vmem:[%s226] sm:$0xff] %v228
  %s230 = scalar_lea.vmem %s2, 456
  %s231 = scalar_lea.vmem %s0, 456
  %v232 = vld [vmem:[%s231] sm:$0xff]
  %233 = vst [vmem:[%s230] sm:$0xff] %v232
  %s234 = scalar_lea.vmem %s2, 464
  %s235 = scalar_lea.vmem %s0, 464
  %v236 = vld [vmem:[%s235] sm:$0xff]
  %237 = vst [vmem:[%s234] sm:$0xff] %v236
  %s238 = scalar_lea.vmem %s2, 472
  %s239 = scalar_lea.vmem %s0, 472
  %v240 = vld [vmem:[%s239] sm:$0xff]
  %241 = vst [vmem:[%s238] sm:$0xff] %v240
  %s242 = scalar_lea.vmem %s2, 480
  %s243 = scalar_lea.vmem %s0, 480
  %v244 = vld [vmem:[%s243] sm:$0xff]
  %245 = vst [vmem:[%s242] sm:$0xff] %v244
  %s246 = scalar_lea.vmem %s2, 488
  %s247 = scalar_lea.vmem %s0, 488
  %v248 = vld [vmem:[%s247] sm:$0xff]
  %249 = vst [vmem:[%s246] sm:$0xff] %v248
  %s250 = scalar_lea.vmem %s2, 496
  %s251 = scalar_lea.vmem %s0, 496
  %v252 = vld [vmem:[%s251] sm:$0xff]
  %253 = vst [vmem:[%s250] sm:$0xff] %v252
  %s254 = scalar_lea.vmem %s2, 504
  %s255 = scalar_lea.vmem %s0, 504
  %v256 = vld [vmem:[%s255] sm:$0xff]
  %257 = vst [vmem:[%s254] sm:$0xff] %v256
  %s258 = scalar_lea.vmem %s2, 512
  %s259 = scalar_lea.vmem %s0, 512
  %v260 = vld [vmem:[%s259] sm:$0xff]
  %261 = vst [vmem:[%s258] sm:$0xff] %v260
  %s262 = scalar_lea.vmem %s2, 520
  %s263 = scalar_lea.vmem %s0, 520
  %v264 = vld [vmem:[%s263] sm:$0xff]
  %265 = vst [vmem:[%s262] sm:$0xff] %v264
  %s266 = scalar_lea.vmem %s2, 528
  %s267 = scalar_lea.vmem %s0, 528
  %v268 = vld [vmem:[%s267] sm:$0xff]
  %269 = vst [vmem:[%s266] sm:$0xff] %v268
  %s270 = scalar_lea.vmem %s2, 536
  %s271 = scalar_lea.vmem %s0, 536
  %v272 = vld [vmem:[%s271] sm:$0xff]
  %273 = vst [vmem:[%s270] sm:$0xff] %v272
  %s274 = scalar_lea.vmem %s2, 544
  %s275 = scalar_lea.vmem %s0, 544
  %v276 = vld [vmem:[%s275] sm:$0xff]
  %277 = vst [vmem:[%s274] sm:$0xff] %v276
  %s278 = scalar_lea.vmem %s2, 552
  %s279 = scalar_lea.vmem %s0, 552
  %v280 = vld [vmem:[%s279] sm:$0xff]
  %281 = vst [vmem:[%s278] sm:$0xff] %v280
  %s282 = scalar_lea.vmem %s2, 560
  %s283 = scalar_lea.vmem %s0, 560
  %v284 = vld [vmem:[%s283] sm:$0xff]
  %285 = vst [vmem:[%s282] sm:$0xff] %v284
  %s286 = scalar_lea.vmem %s2, 568
  %s287 = scalar_lea.vmem %s0, 568
  %v288 = vld [vmem:[%s287] sm:$0xff]
  %289 = vst [vmem:[%s286] sm:$0xff] %v288
  %s290 = scalar_lea.vmem %s2, 576
  %s291 = scalar_lea.vmem %s0, 576
  %v292 = vld [vmem:[%s291] sm:$0xff]
  %293 = vst [vmem:[%s290] sm:$0xff] %v292
  %s294 = scalar_lea.vmem %s2, 584
  %s295 = scalar_lea.vmem %s0, 584
  %v296 = vld [vmem:[%s295] sm:$0xff]
  %297 = vst [vmem:[%s294] sm:$0xff] %v296
  %s298 = scalar_lea.vmem %s2, 592
  %s299 = scalar_lea.vmem %s0, 592
  %v300 = vld [vmem:[%s299] sm:$0xff]
  %301 = vst [vmem:[%s298] sm:$0xff] %v300
  %s302 = scalar_lea.vmem %s2, 600
  %s303 = scalar_lea.vmem %s0, 600
  %v304 = vld [vmem:[%s303] sm:$0xff]
  %305 = vst [vmem:[%s302] sm:$0xff] %v304
  %s306 = scalar_lea.vmem %s2, 608
  %s307 = scalar_lea.vmem %s0, 608
  %v308 = vld [vmem:[%s307] sm:$0xff]
  %309 = vst [vmem:[%s306] sm:$0xff] %v308
  %s310 = scalar_lea.vmem %s2, 616
  %s311 = scalar_lea.vmem %s0, 616
  %v312 = vld [vmem:[%s311] sm:$0xff]
  %313 = vst [vmem:[%s310] sm:$0xff] %v312
  %s314 = scalar_lea.vmem %s2, 624
  %s315 = scalar_lea.vmem %s0, 624
  %v316 = vld [vmem:[%s315] sm:$0xff]
  %317 = vst [vmem:[%s314] sm:$0xff] %v316
  %s318 = scalar_lea.vmem %s2, 632
  %s319 = scalar_lea.vmem %s0, 632
  %v320 = vld [vmem:[%s319] sm:$0xff]
  %321 = vst [vmem:[%s318] sm:$0xff] %v320
  %s322 = scalar_lea.vmem %s2, 640
  %s323 = scalar_lea.vmem %s0, 640
  %v324 = vld [vmem:[%s323] sm:$0xff]
  %325 = vst [vmem:[%s322] sm:$0xff] %v324
  %s326 = scalar_lea.vmem %s2, 648
  %s327 = scalar_lea.vmem %s0, 648
  %v328 = vld [vmem:[%s327] sm:$0xff]
  %329 = vst [vmem:[%s326] sm:$0xff] %v328
  %s330 = scalar_lea.vmem %s2, 656
  %s331 = scalar_lea.vmem %s0, 656
  %v332 = vld [vmem:[%s331] sm:$0xff]
  %333 = vst [vmem:[%s330] sm:$0xff] %v332
  %s334 = scalar_lea.vmem %s2, 664
  %s335 = scalar_lea.vmem %s0, 664
  %v336 = vld [vmem:[%s335] sm:$0xff]
  %337 = vst [vmem:[%s334] sm:$0xff] %v336
  %s338 = scalar_lea.vmem %s2, 672
  %s339 = scalar_lea.vmem %s0, 672
  %v340 = vld [vmem:[%s339] sm:$0xff]
  %341 = vst [vmem:[%s338] sm:$0xff] %v340
  %s342 = scalar_lea.vmem %s2, 680
  %s343 = scalar_lea.vmem %s0, 680
  %v344 = vld [vmem:[%s343] sm:$0xff]
  %345 = vst [vmem:[%s342] sm:$0xff] %v344
  %s346 = scalar_lea.vmem %s2, 688
  %s347 = scalar_lea.vmem %s0, 688
  %v348 = vld [vmem:[%s347] sm:$0xff]
  %349 = vst [vmem:[%s346] sm:$0xff] %v348
  %s350 = scalar_lea.vmem %s2, 696
  %s351 = scalar_lea.vmem %s0, 696
  %v352 = vld [vmem:[%s351] sm:$0xff]
  %353 = vst [vmem:[%s350] sm:$0xff] %v352
  %s354 = scalar_lea.vmem %s2, 704
  %s355 = scalar_lea.vmem %s0, 704
  %v356 = vld [vmem:[%s355] sm:$0xff]
  %357 = vst [vmem:[%s354] sm:$0xff] %v356
  %s358 = scalar_lea.vmem %s2, 712
  %s359 = scalar_lea.vmem %s0, 712
  %v360 = vld [vmem:[%s359] sm:$0xff]
  %361 = vst [vmem:[%s358] sm:$0xff] %v360
  %s362 = scalar_lea.vmem %s2, 720
  %s363 = scalar_lea.vmem %s0, 720
  %v364 = vld [vmem:[%s363] sm:$0xff]
  %365 = vst [vmem:[%s362] sm:$0xff] %v364
  %s366 = scalar_lea.vmem %s2, 728
  %s367 = scalar_lea.vmem %s0, 728
  %v368 = vld [vmem:[%s367] sm:$0xff]
  %369 = vst [vmem:[%s366] sm:$0xff] %v368
  %s370 = scalar_lea.vmem %s2, 736
  %s371 = scalar_lea.vmem %s0, 736
  %v372 = vld [vmem:[%s371] sm:$0xff]
  %373 = vst [vmem:[%s370] sm:$0xff] %v372
  %s374 = scalar_lea.vmem %s2, 744
  %s375 = scalar_lea.vmem %s0, 744
  %v376 = vld [vmem:[%s375] sm:$0xff]
  %377 = vst [vmem:[%s374] sm:$0xff] %v376
  %s378 = scalar_lea.vmem %s2, 752
  %s379 = scalar_lea.vmem %s0, 752
  %v380 = vld [vmem:[%s379] sm:$0xff]
  %381 = vst [vmem:[%s378] sm:$0xff] %v380
  %s382 = scalar_lea.vmem %s2, 760
  %s383 = scalar_lea.vmem %s0, 760
  %v384 = vld [vmem:[%s383] sm:$0xff]
  %385 = vst [vmem:[%s382] sm:$0xff] %v384
  %s386 = scalar_lea.vmem %s2, 768
  %s387 = scalar_lea.vmem %s0, 768
  %v388 = vld [vmem:[%s387] sm:$0xff]
  %389 = vst [vmem:[%s386] sm:$0xff] %v388
  %s390 = scalar_lea.vmem %s2, 776
  %s391 = scalar_lea.vmem %s0, 776
  %v392 = vld [vmem:[%s391] sm:$0xff]
  %393 = vst [vmem:[%s390] sm:$0xff] %v392
  %s394 = scalar_lea.vmem %s2, 784
  %s395 = scalar_lea.vmem %s0, 784
  %v396 = vld [vmem:[%s395] sm:$0xff]
  %397 = vst [vmem:[%s394] sm:$0xff] %v396
  %s398 = scalar_lea.vmem %s2, 792
  %s399 = scalar_lea.vmem %s0, 792
  %v400 = vld [vmem:[%s399] sm:$0xff]
  %401 = vst [vmem:[%s398] sm:$0xff] %v400
  %s402 = scalar_lea.vmem %s2, 800
  %s403 = scalar_lea.vmem %s0, 800
  %v404 = vld [vmem:[%s403] sm:$0xff]
  %405 = vst [vmem:[%s402] sm:$0xff] %v404
  %s406 = scalar_lea.vmem %s2, 808
  %s407 = scalar_lea.vmem %s0, 808
  %v408 = vld [vmem:[%s407] sm:$0xff]
  %409 = vst [vmem:[%s406] sm:$0xff] %v408
  %s410 = scalar_lea.vmem %s2, 816
  %s411 = scalar_lea.vmem %s0, 816
  %v412 = vld [vmem:[%s411] sm:$0xff]
  %413 = vst [vmem:[%s410] sm:$0xff] %v412
  %s414 = scalar_lea.vmem %s2, 824
  %s415 = scalar_lea.vmem %s0, 824
  %v416 = vld [vmem:[%s415] sm:$0xff]
  %417 = vst [vmem:[%s414] sm:$0xff] %v416
  %s418 = scalar_lea.vmem %s2, 832
  %s419 = scalar_lea.vmem %s0, 832
  %v420 = vld [vmem:[%s419] sm:$0xff]
  %421 = vst [vmem:[%s418] sm:$0xff] %v420
  %s422 = scalar_lea.vmem %s2, 840
  %s423 = scalar_lea.vmem %s0, 840
  %v424 = vld [vmem:[%s423] sm:$0xff]
  %425 = vst [vmem:[%s422] sm:$0xff] %v424
  %s426 = scalar_lea.vmem %s2, 848
  %s427 = scalar_lea.vmem %s0, 848
  %v428 = vld [vmem:[%s427] sm:$0xff]
  %429 = vst [vmem:[%s426] sm:$0xff] %v428
  %s430 = scalar_lea.vmem %s2, 856
  %s431 = scalar_lea.vmem %s0, 856
  %v432 = vld [vmem:[%s431] sm:$0xff]
  %433 = vst [vmem:[%s430] sm:$0xff] %v432
  %s434 = scalar_lea.vmem %s2, 864
  %s435 = scalar_lea.vmem %s0, 864
  %v436 = vld [vmem:[%s435] sm:$0xff]
  %437 = vst [vmem:[%s434] sm:$0xff] %v436
  %s438 = scalar_lea.vmem %s2, 872
  %s439 = scalar_lea.vmem %s0, 872
  %v440 = vld [vmem:[%s439] sm:$0xff]
  %441 = vst [vmem:[%s438] sm:$0xff] %v440
  %s442 = scalar_lea.vmem %s2, 880
  %s443 = scalar_lea.vmem %s0, 880
  %v444 = vld [vmem:[%s443] sm:$0xff]
  %445 = vst [vmem:[%s442] sm:$0xff] %v444
  %s446 = scalar_lea.vmem %s2, 888
  %s447 = scalar_lea.vmem %s0, 888
  %v448 = vld [vmem:[%s447] sm:$0xff]
  %449 = vst [vmem:[%s446] sm:$0xff] %v448
  %s450 = scalar_lea.vmem %s2, 896
  %s451 = scalar_lea.vmem %s0, 896
  %v452 = vld [vmem:[%s451] sm:$0xff]
  %453 = vst [vmem:[%s450] sm:$0xff] %v452
  %s454 = scalar_lea.vmem %s2, 904
  %s455 = scalar_lea.vmem %s0, 904
  %v456 = vld [vmem:[%s455] sm:$0xff]
  %457 = vst [vmem:[%s454] sm:$0xff] %v456
  %s458 = scalar_lea.vmem %s2, 912
  %s459 = scalar_lea.vmem %s0, 912
  %v460 = vld [vmem:[%s459] sm:$0xff]
  %461 = vst [vmem:[%s458] sm:$0xff] %v460
  %s462 = scalar_lea.vmem %s2, 920
  %s463 = scalar_lea.vmem %s0, 920
  %v464 = vld [vmem:[%s463] sm:$0xff]
  %465 = vst [vmem:[%s462] sm:$0xff] %v464
  %s466 = scalar_lea.vmem %s2, 928
  %s467 = scalar_lea.vmem %s0, 928
  %v468 = vld [vmem:[%s467] sm:$0xff]
  %469 = vst [vmem:[%s466] sm:$0xff] %v468
  %s470 = scalar_lea.vmem %s2, 936
  %s471 = scalar_lea.vmem %s0, 936
  %v472 = vld [vmem:[%s471] sm:$0xff]
  %473 = vst [vmem:[%s470] sm:$0xff] %v472
  %s474 = scalar_lea.vmem %s2, 944
  %s475 = scalar_lea.vmem %s0, 944
  %v476 = vld [vmem:[%s475] sm:$0xff]
  %477 = vst [vmem:[%s474] sm:$0xff] %v476
  %s478 = scalar_lea.vmem %s2, 952
  %s479 = scalar_lea.vmem %s0, 952
  %v480 = vld [vmem:[%s479] sm:$0xff]
  %481 = vst [vmem:[%s478] sm:$0xff] %v480
  %s482 = scalar_lea.vmem %s2, 960
  %s483 = scalar_lea.vmem %s0, 960
  %v484 = vld [vmem:[%s483] sm:$0xff]
  %485 = vst [vmem:[%s482] sm:$0xff] %v484
  %s486 = scalar_lea.vmem %s2, 968
  %s487 = scalar_lea.vmem %s0, 968
  %v488 = vld [vmem:[%s487] sm:$0xff]
  %489 = vst [vmem:[%s486] sm:$0xff] %v488
  %s490 = scalar_lea.vmem %s2, 976
  %s491 = scalar_lea.vmem %s0, 976
  %v492 = vld [vmem:[%s491] sm:$0xff]
  %493 = vst [vmem:[%s490] sm:$0xff] %v492
  %s494 = scalar_lea.vmem %s2, 984
  %s495 = scalar_lea.vmem %s0, 984
  %v496 = vld [vmem:[%s495] sm:$0xff]
  %497 = vst [vmem:[%s494] sm:$0xff] %v496
  %s498 = scalar_lea.vmem %s2, 992
  %s499 = scalar_lea.vmem %s0, 992
  %v500 = vld [vmem:[%s499] sm:$0xff]
  %501 = vst [vmem:[%s498] sm:$0xff] %v500
  %s502 = scalar_lea.vmem %s2, 1000
  %s503 = scalar_lea.vmem %s0, 1000
  %v504 = vld [vmem:[%s503] sm:$0xff]
  %505 = vst [vmem:[%s502] sm:$0xff] %v504
  %s506 = scalar_lea.vmem %s2, 1008
  %s507 = scalar_lea.vmem %s0, 1008
  %v508 = vld [vmem:[%s507] sm:$0xff]
  %509 = vst [vmem:[%s506] sm:$0xff] %v508
  %s510 = scalar_lea.vmem %s2, 1016
  %s511 = scalar_lea.vmem %s0, 1016
  %v512 = vld [vmem:[%s511] sm:$0xff]
  %513 = vst [vmem:[%s510] sm:$0xff] %v512
  %s514 = scalar_lea.vmem %s2, 1024
  %s515 = scalar_lea.vmem %s0, 1024
  %v516 = vld [vmem:[%s515] sm:$0xff]
  %517 = vst [vmem:[%s514] sm:$0xff] %v516
  %s518 = scalar_lea.vmem %s2, 1032
  %s519 = scalar_lea.vmem %s0, 1032
  %v520 = vld [vmem:[%s519] sm:$0xff]
  %521 = vst [vmem:[%s518] sm:$0xff] %v520
  %s522 = scalar_lea.vmem %s2, 1040
  %s523 = scalar_lea.vmem %s0, 1040
  %v524 = vld [vmem:[%s523] sm:$0xff]
  %525 = vst [vmem:[%s522] sm:$0xff] %v524
  %s526 = scalar_lea.vmem %s2, 1048
  %s527 = scalar_lea.vmem %s0, 1048
  %v528 = vld [vmem:[%s527] sm:$0xff]
  %529 = vst [vmem:[%s526] sm:$0xff] %v528
  %s530 = scalar_lea.vmem %s2, 1056
  %s531 = scalar_lea.vmem %s0, 1056
  %v532 = vld [vmem:[%s531] sm:$0xff]
  %533 = vst [vmem:[%s530] sm:$0xff] %v532
  %s534 = scalar_lea.vmem %s2, 1064
  %s535 = scalar_lea.vmem %s0, 1064
  %v536 = vld [vmem:[%s535] sm:$0xff]
  %537 = vst [vmem:[%s534] sm:$0xff] %v536
  %s538 = scalar_lea.vmem %s2, 1072
  %s539 = scalar_lea.vmem %s0, 1072
  %v540 = vld [vmem:[%s539] sm:$0xff]
  %541 = vst [vmem:[%s538] sm:$0xff] %v540
  %s542 = scalar_lea.vmem %s2, 1080
  %s543 = scalar_lea.vmem %s0, 1080
  %v544 = vld [vmem:[%s543] sm:$0xff]
  %545 = vst [vmem:[%s542] sm:$0xff] %v544
  %s546 = scalar_lea.vmem %s2, 1088
  %s547 = scalar_lea.vmem %s0, 1088
  %v548 = vld [vmem:[%s547] sm:$0xff]
  %549 = vst [vmem:[%s546] sm:$0xff] %v548
  %s550 = scalar_lea.vmem %s2, 1096
  %s551 = scalar_lea.vmem %s0, 1096
  %v552 = vld [vmem:[%s551] sm:$0xff]
  %553 = vst [vmem:[%s550] sm:$0xff] %v552
  %s554 = scalar_lea.vmem %s2, 1104
  %s555 = scalar_lea.vmem %s0, 1104
  %v556 = vld [vmem:[%s555] sm:$0xff]
  %557 = vst [vmem:[%s554] sm:$0xff] %v556
  %s558 = scalar_lea.vmem %s2, 1112
  %s559 = scalar_lea.vmem %s0, 1112
  %v560 = vld [vmem:[%s559] sm:$0xff]
  %561 = vst [vmem:[%s558] sm:$0xff] %v560
  %s562 = scalar_lea.vmem %s2, 1120
  %s563 = scalar_lea.vmem %s0, 1120
  %v564 = vld [vmem:[%s563] sm:$0xff]
  %565 = vst [vmem:[%s562] sm:$0xff] %v564
  %s566 = scalar_lea.vmem %s2, 1128
  %s567 = scalar_lea.vmem %s0, 1128
  %v568 = vld [vmem:[%s567] sm:$0xff]
  %569 = vst [vmem:[%s566] sm:$0xff] %v568
  %s570 = scalar_lea.vmem %s2, 1136
  %s571 = scalar_lea.vmem %s0, 1136
  %v572 = vld [vmem:[%s571] sm:$0xff]
  %573 = vst [vmem:[%s570] sm:$0xff] %v572
  %s574 = scalar_lea.vmem %s2, 1144
  %s575 = scalar_lea.vmem %s0, 1144
  %v576 = vld [vmem:[%s575] sm:$0xff]
  %577 = vst [vmem:[%s574] sm:$0xff] %v576
  %s578 = scalar_lea.vmem %s2, 1152
  %s579 = scalar_lea.vmem %s0, 1152
  %v580 = vld [vmem:[%s579] sm:$0xff]
  %581 = vst [vmem:[%s578] sm:$0xff] %v580
  %s582 = scalar_lea.vmem %s2, 1160
  %s583 = scalar_lea.vmem %s0, 1160
  %v584 = vld [vmem:[%s583] sm:$0xff]
  %585 = vst [vmem:[%s582] sm:$0xff] %v584
  %s586 = scalar_lea.vmem %s2, 1168
  %s587 = scalar_lea.vmem %s0, 1168
  %v588 = vld [vmem:[%s587] sm:$0xff]
  %589 = vst [vmem:[%s586] sm:$0xff] %v588
  %s590 = scalar_lea.vmem %s2, 1176
  %s591 = scalar_lea.vmem %s0, 1176
  %v592 = vld [vmem:[%s591] sm:$0xff]
  %593 = vst [vmem:[%s590] sm:$0xff] %v592
  %s594 = scalar_lea.vmem %s2, 1184
  %s595 = scalar_lea.vmem %s0, 1184
  %v596 = vld [vmem:[%s595] sm:$0xff]
  %597 = vst [vmem:[%s594] sm:$0xff] %v596
  %s598 = scalar_lea.vmem %s2, 1192
  %s599 = scalar_lea.vmem %s0, 1192
  %v600 = vld [vmem:[%s599] sm:$0xff]
  %601 = vst [vmem:[%s598] sm:$0xff] %v600
  %s602 = scalar_lea.vmem %s2, 1200
  %s603 = scalar_lea.vmem %s0, 1200
  %v604 = vld [vmem:[%s603] sm:$0xff]
  %605 = vst [vmem:[%s602] sm:$0xff] %v604
  %s606 = scalar_lea.vmem %s2, 1208
  %s607 = scalar_lea.vmem %s0, 1208
  %v608 = vld [vmem:[%s607] sm:$0xff]
  %609 = vst [vmem:[%s606] sm:$0xff] %v608
  %s610 = scalar_lea.vmem %s2, 1216
  %s611 = scalar_lea.vmem %s0, 1216
  %v612 = vld [vmem:[%s611] sm:$0xff]
  %613 = vst [vmem:[%s610] sm:$0xff] %v612
  %s614 = scalar_lea.vmem %s2, 1224
  %s615 = scalar_lea.vmem %s0, 1224
  %v616 = vld [vmem:[%s615] sm:$0xff]
  %617 = vst [vmem:[%s614] sm:$0xff] %v616
  %s618 = scalar_lea.vmem %s2, 1232
  %s619 = scalar_lea.vmem %s0, 1232
  %v620 = vld [vmem:[%s619] sm:$0xff]
  %621 = vst [vmem:[%s618] sm:$0xff] %v620
  %s622 = scalar_lea.vmem %s2, 1240
  %s623 = scalar_lea.vmem %s0, 1240
  %v624 = vld [vmem:[%s623] sm:$0xff]
  %625 = vst [vmem:[%s622] sm:$0xff] %v624
  %s626 = scalar_lea.vmem %s2, 1248
  %s627 = scalar_lea.vmem %s0, 1248
  %v628 = vld [vmem:[%s627] sm:$0xff]
  %629 = vst [vmem:[%s626] sm:$0xff] %v628
  %s630 = scalar_lea.vmem %s2, 1256
  %s631 = scalar_lea.vmem %s0, 1256
  %v632 = vld [vmem:[%s631] sm:$0xff]
  %633 = vst [vmem:[%s630] sm:$0xff] %v632
  %s634 = scalar_lea.vmem %s2, 1264
  %s635 = scalar_lea.vmem %s0, 1264
  %v636 = vld [vmem:[%s635] sm:$0xff]
  %637 = vst [vmem:[%s634] sm:$0xff] %v636
  %s638 = scalar_lea.vmem %s2, 1272
  %s639 = scalar_lea.vmem %s0, 1272
  %v640 = vld [vmem:[%s639] sm:$0xff]
  %641 = vst [vmem:[%s638] sm:$0xff] %v640
  %s642 = scalar_lea.vmem %s2, 1280
  %s643 = scalar_lea.vmem %s0, 1280
  %v644 = vld [vmem:[%s643] sm:$0xff]
  %645 = vst [vmem:[%s642] sm:$0xff] %v644
  %s646 = scalar_lea.vmem %s2, 1288
  %s647 = scalar_lea.vmem %s0, 1288
  %v648 = vld [vmem:[%s647] sm:$0xff]
  %649 = vst [vmem:[%s646] sm:$0xff] %v648
  %s650 = scalar_lea.vmem %s2, 1296
  %s651 = scalar_lea.vmem %s0, 1296
  %v652 = vld [vmem:[%s651] sm:$0xff]
  %653 = vst [vmem:[%s650] sm:$0xff] %v652
  %s654 = scalar_lea.vmem %s2, 1304
  %s655 = scalar_lea.vmem %s0, 1304
  %v656 = vld [vmem:[%s655] sm:$0xff]
  %657 = vst [vmem:[%s654] sm:$0xff] %v656
  %s658 = scalar_lea.vmem %s2, 1312
  %s659 = scalar_lea.vmem %s0, 1312
  %v660 = vld [vmem:[%s659] sm:$0xff]
  %661 = vst [vmem:[%s658] sm:$0xff] %v660
  %s662 = scalar_lea.vmem %s2, 1320
  %s663 = scalar_lea.vmem %s0, 1320
  %v664 = vld [vmem:[%s663] sm:$0xff]
  %665 = vst [vmem:[%s662] sm:$0xff] %v664
  %s666 = scalar_lea.vmem %s2, 1328
  %s667 = scalar_lea.vmem %s0, 1328
  %v668 = vld [vmem:[%s667] sm:$0xff]
  %669 = vst [vmem:[%s666] sm:$0xff] %v668
  %s670 = scalar_lea.vmem %s2, 1336
  %s671 = scalar_lea.vmem %s0, 1336
  %v672 = vld [vmem:[%s671] sm:$0xff]
  %673 = vst [vmem:[%s670] sm:$0xff] %v672
  %s674 = scalar_lea.vmem %s2, 1344
  %s675 = scalar_lea.vmem %s0, 1344
  %v676 = vld [vmem:[%s675] sm:$0xff]
  %677 = vst [vmem:[%s674] sm:$0xff] %v676
  %s678 = scalar_lea.vmem %s2, 1352
  %s679 = scalar_lea.vmem %s0, 1352
  %v680 = vld [vmem:[%s679] sm:$0xff]
  %681 = vst [vmem:[%s678] sm:$0xff] %v680
  %s682 = scalar_lea.vmem %s2, 1360
  %s683 = scalar_lea.vmem %s0, 1360
  %v684 = vld [vmem:[%s683] sm:$0xff]
  %685 = vst [vmem:[%s682] sm:$0xff] %v684
  %s686 = scalar_lea.vmem %s2, 1368
  %s687 = scalar_lea.vmem %s0, 1368
  %v688 = vld [vmem:[%s687] sm:$0xff]
  %689 = vst [vmem:[%s686] sm:$0xff] %v688
  %s690 = scalar_lea.vmem %s2, 1376
  %s691 = scalar_lea.vmem %s0, 1376
  %v692 = vld [vmem:[%s691] sm:$0xff]
  %693 = vst [vmem:[%s690] sm:$0xff] %v692
  %s694 = scalar_lea.vmem %s2, 1384
  %s695 = scalar_lea.vmem %s0, 1384
  %v696 = vld [vmem:[%s695] sm:$0xff]
  %697 = vst [vmem:[%s694] sm:$0xff] %v696
  %s698 = scalar_lea.vmem %s2, 1392
  %s699 = scalar_lea.vmem %s0, 1392
  %v700 = vld [vmem:[%s699] sm:$0xff]
  %701 = vst [vmem:[%s698] sm:$0xff] %v700
  %s702 = scalar_lea.vmem %s2, 1400
  %s703 = scalar_lea.vmem %s0, 1400
  %v704 = vld [vmem:[%s703] sm:$0xff]
  %705 = vst [vmem:[%s702] sm:$0xff] %v704
  %s706 = scalar_lea.vmem %s2, 1408
  %s707 = scalar_lea.vmem %s0, 1408
  %v708 = vld [vmem:[%s707] sm:$0xff]
  %709 = vst [vmem:[%s706] sm:$0xff] %v708
  %s710 = scalar_lea.vmem %s2, 1416
  %s711 = scalar_lea.vmem %s0, 1416
  %v712 = vld [vmem:[%s711] sm:$0xff]
  %713 = vst [vmem:[%s710] sm:$0xff] %v712
  %s714 = scalar_lea.vmem %s2, 1424
  %s715 = scalar_lea.vmem %s0, 1424
  %v716 = vld [vmem:[%s715] sm:$0xff]
  %717 = vst [vmem:[%s714] sm:$0xff] %v716
  %s718 = scalar_lea.vmem %s2, 1432
  %s719 = scalar_lea.vmem %s0, 1432
  %v720 = vld [vmem:[%s719] sm:$0xff]
  %721 = vst [vmem:[%s718] sm:$0xff] %v720
  %s722 = scalar_lea.vmem %s2, 1440
  %s723 = scalar_lea.vmem %s0, 1440
  %v724 = vld [vmem:[%s723] sm:$0xff]
  %725 = vst [vmem:[%s722] sm:$0xff] %v724
  %s726 = scalar_lea.vmem %s2, 1448
  %s727 = scalar_lea.vmem %s0, 1448
  %v728 = vld [vmem:[%s727] sm:$0xff]
  %729 = vst [vmem:[%s726] sm:$0xff] %v728
  %s730 = scalar_lea.vmem %s2, 1456
  %s731 = scalar_lea.vmem %s0, 1456
  %v732 = vld [vmem:[%s731] sm:$0xff]
  %733 = vst [vmem:[%s730] sm:$0xff] %v732
  %s734 = scalar_lea.vmem %s2, 1464
  %s735 = scalar_lea.vmem %s0, 1464
  %v736 = vld [vmem:[%s735] sm:$0xff]
  %737 = vst [vmem:[%s734] sm:$0xff] %v736
  %s738 = scalar_lea.vmem %s2, 1472
  %s739 = scalar_lea.vmem %s0, 1472
  %v740 = vld [vmem:[%s739] sm:$0xff]
  %741 = vst [vmem:[%s738] sm:$0xff] %v740
  %s742 = scalar_lea.vmem %s2, 1480
  %s743 = scalar_lea.vmem %s0, 1480
  %v744 = vld [vmem:[%s743] sm:$0xff]
  %745 = vst [vmem:[%s742] sm:$0xff] %v744
  %s746 = scalar_lea.vmem %s2, 1488
  %s747 = scalar_lea.vmem %s0, 1488
  %v748 = vld [vmem:[%s747] sm:$0xff]
  %749 = vst [vmem:[%s746] sm:$0xff] %v748
  %s750 = scalar_lea.vmem %s2, 1496
  %s751 = scalar_lea.vmem %s0, 1496
  %v752 = vld [vmem:[%s751] sm:$0xff]
  %753 = vst [vmem:[%s750] sm:$0xff] %v752
  %s754 = scalar_lea.vmem %s2, 1504
  %s755 = scalar_lea.vmem %s0, 1504
  %v756 = vld [vmem:[%s755] sm:$0xff]
  %757 = vst [vmem:[%s754] sm:$0xff] %v756
  %s758 = scalar_lea.vmem %s2, 1512
  %s759 = scalar_lea.vmem %s0, 1512
  %v760 = vld [vmem:[%s759] sm:$0xff]
  %761 = vst [vmem:[%s758] sm:$0xff] %v760
  %s762 = scalar_lea.vmem %s2, 1520
  %s763 = scalar_lea.vmem %s0, 1520
  %v764 = vld [vmem:[%s763] sm:$0xff]
  %765 = vst [vmem:[%s762] sm:$0xff] %v764
  %s766 = scalar_lea.vmem %s2, 1528
  %s767 = scalar_lea.vmem %s0, 1528
  %v768 = vld [vmem:[%s767] sm:$0xff]
  %769 = vst [vmem:[%s766] sm:$0xff] %v768
  %s770 = scalar_lea.vmem %s2, 1536
  %s771 = scalar_lea.vmem %s0, 1536
  %v772 = vld [vmem:[%s771] sm:$0xff]
  %773 = vst [vmem:[%s770] sm:$0xff] %v772
  %s774 = scalar_lea.vmem %s2, 1544
  %s775 = scalar_lea.vmem %s0, 1544
  %v776 = vld [vmem:[%s775] sm:$0xff]
  %777 = vst [vmem:[%s774] sm:$0xff] %v776
  %s778 = scalar_lea.vmem %s2, 1552
  %s779 = scalar_lea.vmem %s0, 1552
  %v780 = vld [vmem:[%s779] sm:$0xff]
  %781 = vst [vmem:[%s778] sm:$0xff] %v780
  %s782 = scalar_lea.vmem %s2, 1560
  %s783 = scalar_lea.vmem %s0, 1560
  %v784 = vld [vmem:[%s783] sm:$0xff]
  %785 = vst [vmem:[%s782] sm:$0xff] %v784
  %s786 = scalar_lea.vmem %s2, 1568
  %s787 = scalar_lea.vmem %s0, 1568
  %v788 = vld [vmem:[%s787] sm:$0xff]
  %789 = vst [vmem:[%s786] sm:$0xff] %v788
  %s790 = scalar_lea.vmem %s2, 1576
  %s791 = scalar_lea.vmem %s0, 1576
  %v792 = vld [vmem:[%s791] sm:$0xff]
  %793 = vst [vmem:[%s790] sm:$0xff] %v792
  %s794 = scalar_lea.vmem %s2, 1584
  %s795 = scalar_lea.vmem %s0, 1584
  %v796 = vld [vmem:[%s795] sm:$0xff]
  %797 = vst [vmem:[%s794] sm:$0xff] %v796
  %s798 = scalar_lea.vmem %s2, 1592
  %s799 = scalar_lea.vmem %s0, 1592
  %v800 = vld [vmem:[%s799] sm:$0xff]
  %801 = vst [vmem:[%s798] sm:$0xff] %v800
  %s802 = scalar_lea.vmem %s2, 1600
  %s803 = scalar_lea.vmem %s0, 1600
  %v804 = vld [vmem:[%s803] sm:$0xff]
  %805 = vst [vmem:[%s802] sm:$0xff] %v804
  %s806 = scalar_lea.vmem %s2, 1608
  %s807 = scalar_lea.vmem %s0, 1608
  %v808 = vld [vmem:[%s807] sm:$0xff]
  %809 = vst [vmem:[%s806] sm:$0xff] %v808
  %s810 = scalar_lea.vmem %s2, 1616
  %s811 = scalar_lea.vmem %s0, 1616
  %v812 = vld [vmem:[%s811] sm:$0xff]
  %813 = vst [vmem:[%s810] sm:$0xff] %v812
  %s814 = scalar_lea.vmem %s2, 1624
  %s815 = scalar_lea.vmem %s0, 1624
  %v816 = vld [vmem:[%s815] sm:$0xff]
  %817 = vst [vmem:[%s814] sm:$0xff] %v816
  %s818 = scalar_lea.vmem %s2, 1632
  %s819 = scalar_lea.vmem %s0, 1632
  %v820 = vld [vmem:[%s819] sm:$0xff]
  %821 = vst [vmem:[%s818] sm:$0xff] %v820
  %s822 = scalar_lea.vmem %s2, 1640
  %s823 = scalar_lea.vmem %s0, 1640
  %v824 = vld [vmem:[%s823] sm:$0xff]
  %825 = vst [vmem:[%s822] sm:$0xff] %v824
  %s826 = scalar_lea.vmem %s2, 1648
  %s827 = scalar_lea.vmem %s0, 1648
  %v828 = vld [vmem:[%s827] sm:$0xff]
  %829 = vst [vmem:[%s826] sm:$0xff] %v828
  %s830 = scalar_lea.vmem %s2, 1656
  %s831 = scalar_lea.vmem %s0, 1656
  %v832 = vld [vmem:[%s831] sm:$0xff]
  %833 = vst [vmem:[%s830] sm:$0xff] %v832
  %s834 = scalar_lea.vmem %s2, 1664
  %s835 = scalar_lea.vmem %s0, 1664
  %v836 = vld [vmem:[%s835] sm:$0xff]
  %837 = vst [vmem:[%s834] sm:$0xff] %v836
  %s838 = scalar_lea.vmem %s2, 1672
  %s839 = scalar_lea.vmem %s0, 1672
  %v840 = vld [vmem:[%s839] sm:$0xff]
  %841 = vst [vmem:[%s838] sm:$0xff] %v840
  %s842 = scalar_lea.vmem %s2, 1680
  %s843 = scalar_lea.vmem %s0, 1680
  %v844 = vld [vmem:[%s843] sm:$0xff]
  %845 = vst [vmem:[%s842] sm:$0xff] %v844
  %s846 = scalar_lea.vmem %s2, 1688
  %s847 = scalar_lea.vmem %s0, 1688
  %v848 = vld [vmem:[%s847] sm:$0xff]
  %849 = vst [vmem:[%s846] sm:$0xff] %v848
  %s850 = scalar_lea.vmem %s2, 1696
  %s851 = scalar_lea.vmem %s0, 1696
  %v852 = vld [vmem:[%s851] sm:$0xff]
  %853 = vst [vmem:[%s850] sm:$0xff] %v852
  %s854 = scalar_lea.vmem %s2, 1704
  %s855 = scalar_lea.vmem %s0, 1704
  %v856 = vld [vmem:[%s855] sm:$0xff]
  %857 = vst [vmem:[%s854] sm:$0xff] %v856
  %s858 = scalar_lea.vmem %s2, 1712
  %s859 = scalar_lea.vmem %s0, 1712
  %v860 = vld [vmem:[%s859] sm:$0xff]
  %861 = vst [vmem:[%s858] sm:$0xff] %v860
  %s862 = scalar_lea.vmem %s2, 1720
  %s863 = scalar_lea.vmem %s0, 1720
  %v864 = vld [vmem:[%s863] sm:$0xff]
  %865 = vst [vmem:[%s862] sm:$0xff] %v864
  %s866 = scalar_lea.vmem %s2, 1728
  %s867 = scalar_lea.vmem %s0, 1728
  %v868 = vld [vmem:[%s867] sm:$0xff]
  %869 = vst [vmem:[%s866] sm:$0xff] %v868
  %s870 = scalar_lea.vmem %s2, 1736
  %s871 = scalar_lea.vmem %s0, 1736
  %v872 = vld [vmem:[%s871] sm:$0xff]
  %873 = vst [vmem:[%s870] sm:$0xff] %v872
  %s874 = scalar_lea.vmem %s2, 1744
  %s875 = scalar_lea.vmem %s0, 1744
  %v876 = vld [vmem:[%s875] sm:$0xff]
  %877 = vst [vmem:[%s874] sm:$0xff] %v876
  %s878 = scalar_lea.vmem %s2, 1752
  %s879 = scalar_lea.vmem %s0, 1752
  %v880 = vld [vmem:[%s879] sm:$0xff]
  %881 = vst [vmem:[%s878] sm:$0xff] %v880
  %s882 = scalar_lea.vmem %s2, 1760
  %s883 = scalar_lea.vmem %s0, 1760
  %v884 = vld [vmem:[%s883] sm:$0xff]
  %885 = vst [vmem:[%s882] sm:$0xff] %v884
  %s886 = scalar_lea.vmem %s2, 1768
  %s887 = scalar_lea.vmem %s0, 1768
  %v888 = vld [vmem:[%s887] sm:$0xff]
  %889 = vst [vmem:[%s886] sm:$0xff] %v888
  %s890 = scalar_lea.vmem %s2, 1776
  %s891 = scalar_lea.vmem %s0, 1776
  %v892 = vld [vmem:[%s891] sm:$0xff]
  %893 = vst [vmem:[%s890] sm:$0xff] %v892
  %s894 = scalar_lea.vmem %s2, 1784
  %s895 = scalar_lea.vmem %s0, 1784
  %v896 = vld [vmem:[%s895] sm:$0xff]
  %897 = vst [vmem:[%s894] sm:$0xff] %v896
  %s898 = scalar_lea.vmem %s2, 1792
  %s899 = scalar_lea.vmem %s0, 1792
  %v900 = vld [vmem:[%s899] sm:$0xff]
  %901 = vst [vmem:[%s898] sm:$0xff] %v900
  %s902 = scalar_lea.vmem %s2, 1800
  %s903 = scalar_lea.vmem %s0, 1800
  %v904 = vld [vmem:[%s903] sm:$0xff]
  %905 = vst [vmem:[%s902] sm:$0xff] %v904
  %s906 = scalar_lea.vmem %s2, 1808
  %s907 = scalar_lea.vmem %s0, 1808
  %v908 = vld [vmem:[%s907] sm:$0xff]
  %909 = vst [vmem:[%s906] sm:$0xff] %v908
  %s910 = scalar_lea.vmem %s2, 1816
  %s911 = scalar_lea.vmem %s0, 1816
  %v912 = vld [vmem:[%s911] sm:$0xff]
  %913 = vst [vmem:[%s910] sm:$0xff] %v912
  %s914 = scalar_lea.vmem %s2, 1824
  %s915 = scalar_lea.vmem %s0, 1824
  %v916 = vld [vmem:[%s915] sm:$0xff]
  %917 = vst [vmem:[%s914] sm:$0xff] %v916
  %s918 = scalar_lea.vmem %s2, 1832
  %s919 = scalar_lea.vmem %s0, 1832
  %v920 = vld [vmem:[%s919] sm:$0xff]
  %921 = vst [vmem:[%s918] sm:$0xff] %v920
  %s922 = scalar_lea.vmem %s2, 1840
  %s923 = scalar_lea.vmem %s0, 1840
  %v924 = vld [vmem:[%s923] sm:$0xff]
  %925 = vst [vmem:[%s922] sm:$0xff] %v924
  %s926 = scalar_lea.vmem %s2, 1848
  %s927 = scalar_lea.vmem %s0, 1848
  %v928 = vld [vmem:[%s927] sm:$0xff]
  %929 = vst [vmem:[%s926] sm:$0xff] %v928
  %s930 = scalar_lea.vmem %s2, 1856
  %s931 = scalar_lea.vmem %s0, 1856
  %v932 = vld [vmem:[%s931] sm:$0xff]
  %933 = vst [vmem:[%s930] sm:$0xff] %v932
  %s934 = scalar_lea.vmem %s2, 1864
  %s935 = scalar_lea.vmem %s0, 1864
  %v936 = vld [vmem:[%s935] sm:$0xff]
  %937 = vst [vmem:[%s934] sm:$0xff] %v936
  %s938 = scalar_lea.vmem %s2, 1872
  %s939 = scalar_lea.vmem %s0, 1872
  %v940 = vld [vmem:[%s939] sm:$0xff]
  %941 = vst [vmem:[%s938] sm:$0xff] %v940
  %s942 = scalar_lea.vmem %s2, 1880
  %s943 = scalar_lea.vmem %s0, 1880
  %v944 = vld [vmem:[%s943] sm:$0xff]
  %945 = vst [vmem:[%s942] sm:$0xff] %v944
  %s946 = scalar_lea.vmem %s2, 1888
  %s947 = scalar_lea.vmem %s0, 1888
  %v948 = vld [vmem:[%s947] sm:$0xff]
  %949 = vst [vmem:[%s946] sm:$0xff] %v948
  %s950 = scalar_lea.vmem %s2, 1896
  %s951 = scalar_lea.vmem %s0, 1896
  %v952 = vld [vmem:[%s951] sm:$0xff]
  %953 = vst [vmem:[%s950] sm:$0xff] %v952
  %s954 = scalar_lea.vmem %s2, 1904
  %s955 = scalar_lea.vmem %s0, 1904
  %v956 = vld [vmem:[%s955] sm:$0xff]
  %957 = vst [vmem:[%s954] sm:$0xff] %v956
  %s958 = scalar_lea.vmem %s2, 1912
  %s959 = scalar_lea.vmem %s0, 1912
  %v960 = vld [vmem:[%s959] sm:$0xff]
  %961 = vst [vmem:[%s958] sm:$0xff] %v960
  %s962 = scalar_lea.vmem %s2, 1920
  %s963 = scalar_lea.vmem %s0, 1920
  %v964 = vld [vmem:[%s963] sm:$0xff]
  %965 = vst [vmem:[%s962] sm:$0xff] %v964
  %s966 = scalar_lea.vmem %s2, 1928
  %s967 = scalar_lea.vmem %s0, 1928
  %v968 = vld [vmem:[%s967] sm:$0xff]
  %969 = vst [vmem:[%s966] sm:$0xff] %v968
  %s970 = scalar_lea.vmem %s2, 1936
  %s971 = scalar_lea.vmem %s0, 1936
  %v972 = vld [vmem:[%s971] sm:$0xff]
  %973 = vst [vmem:[%s970] sm:$0xff] %v972
  %s974 = scalar_lea.vmem %s2, 1944
  %s975 = scalar_lea.vmem %s0, 1944
  %v976 = vld [vmem:[%s975] sm:$0xff]
  %977 = vst [vmem:[%s974] sm:$0xff] %v976
  %s978 = scalar_lea.vmem %s2, 1952
  %s979 = scalar_lea.vmem %s0, 1952
  %v980 = vld [vmem:[%s979] sm:$0xff]
  %981 = vst [vmem:[%s978] sm:$0xff] %v980
  %s982 = scalar_lea.vmem %s2, 1960
  %s983 = scalar_lea.vmem %s0, 1960
  %v984 = vld [vmem:[%s983] sm:$0xff]
  %985 = vst [vmem:[%s982] sm:$0xff] %v984
  %s986 = scalar_lea.vmem %s2, 1968
  %s987 = scalar_lea.vmem %s0, 1968
  %v988 = vld [vmem:[%s987] sm:$0xff]
  %989 = vst [vmem:[%s986] sm:$0xff] %v988
  %s990 = scalar_lea.vmem %s2, 1976
  %s991 = scalar_lea.vmem %s0, 1976
  %v992 = vld [vmem:[%s991] sm:$0xff]
  %993 = vst [vmem:[%s990] sm:$0xff] %v992
  %s994 = scalar_lea.vmem %s2, 1984
  %s995 = scalar_lea.vmem %s0, 1984
  %v996 = vld [vmem:[%s995] sm:$0xff]
  %997 = vst [vmem:[%s994] sm:$0xff] %v996
  %s998 = scalar_lea.vmem %s2, 1992
  %s999 = scalar_lea.vmem %s0, 1992
  %v1000 = vld [vmem:[%s999] sm:$0xff]
  %1001 = vst [vmem:[%s998] sm:$0xff] %v1000
  %s1002 = scalar_lea.vmem %s2, 2000
  %s1003 = scalar_lea.vmem %s0, 2000
  %v1004 = vld [vmem:[%s1003] sm:$0xff]
  %1005 = vst [vmem:[%s1002] sm:$0xff] %v1004
  %s1006 = scalar_lea.vmem %s2, 2008
  %s1007 = scalar_lea.vmem %s0, 2008
  %v1008 = vld [vmem:[%s1007] sm:$0xff]
  %1009 = vst [vmem:[%s1006] sm:$0xff] %v1008
  %s1010 = scalar_lea.vmem %s2, 2016
  %s1011 = scalar_lea.vmem %s0, 2016
  %v1012 = vld [vmem:[%s1011] sm:$0xff]
  %1013 = vst [vmem:[%s1010] sm:$0xff] %v1012
  %s1014 = scalar_lea.vmem %s2, 2024
  %s1015 = scalar_lea.vmem %s0, 2024
  %v1016 = vld [vmem:[%s1015] sm:$0xff]
  %1017 = vst [vmem:[%s1014] sm:$0xff] %v1016
  %s1018 = scalar_lea.vmem %s2, 2032
  %s1019 = scalar_lea.vmem %s0, 2032
  %v1020 = vld [vmem:[%s1019] sm:$0xff]
  %1021 = vst [vmem:[%s1018] sm:$0xff] %v1020
  %s1022 = scalar_lea.vmem %s2, 2040
  %s1023 = scalar_lea.vmem %s0, 2040
  %v1024 = vld [vmem:[%s1023] sm:$0xff]
  %1025 = vst [vmem:[%s1022] sm:$0xff] %v1024
  %v1026 = vld [vmem:[%s1] sm:$0xff]
  %1027 = vst [vmem:[%s3] sm:$0xff] %v1026
  %s1028 = scalar_lea.vmem %s3, 8
  %s1029 = scalar_lea.vmem %s1, 8
  %v1030 = vld [vmem:[%s1029] sm:$0xff]
  %1031 = vst [vmem:[%s1028] sm:$0xff] %v1030
  %s1032 = scalar_lea.vmem %s3, 16
  %s1033 = scalar_lea.vmem %s1, 16
  %v1034 = vld [vmem:[%s1033] sm:$0xff]
  %1035 = vst [vmem:[%s1032] sm:$0xff] %v1034
  %s1036 = scalar_lea.vmem %s3, 24
  %s1037 = scalar_lea.vmem %s1, 24
  %v1038 = vld [vmem:[%s1037] sm:$0xff]
  %1039 = vst [vmem:[%s1036] sm:$0xff] %v1038
  %s1040 = scalar_lea.vmem %s3, 32
  %s1041 = scalar_lea.vmem %s1, 32
  %v1042 = vld [vmem:[%s1041] sm:$0xff]
  %1043 = vst [vmem:[%s1040] sm:$0xff] %v1042
  %s1044 = scalar_lea.vmem %s3, 40
  %s1045 = scalar_lea.vmem %s1, 40
  %v1046 = vld [vmem:[%s1045] sm:$0xff]
  %1047 = vst [vmem:[%s1044] sm:$0xff] %v1046
  %s1048 = scalar_lea.vmem %s3, 48
  %s1049 = scalar_lea.vmem %s1, 48
  %v1050 = vld [vmem:[%s1049] sm:$0xff]
  %1051 = vst [vmem:[%s1048] sm:$0xff] %v1050
  %s1052 = scalar_lea.vmem %s3, 56
  %s1053 = scalar_lea.vmem %s1, 56
  %v1054 = vld [vmem:[%s1053] sm:$0xff]
  %1055 = vst [vmem:[%s1052] sm:$0xff] %v1054
  %s1056 = scalar_lea.vmem %s3, 64
  %s1057 = scalar_lea.vmem %s1, 64
  %v1058 = vld [vmem:[%s1057] sm:$0xff]
  %1059 = vst [vmem:[%s1056] sm:$0xff] %v1058
  %s1060 = scalar_lea.vmem %s3, 72
  %s1061 = scalar_lea.vmem %s1, 72
  %v1062 = vld [vmem:[%s1061] sm:$0xff]
  %1063 = vst [vmem:[%s1060] sm:$0xff] %v1062
  %s1064 = scalar_lea.vmem %s3, 80
  %s1065 = scalar_lea.vmem %s1, 80
  %v1066 = vld [vmem:[%s1065] sm:$0xff]
  %1067 = vst [vmem:[%s1064] sm:$0xff] %v1066
  %s1068 = scalar_lea.vmem %s3, 88
  %s1069 = scalar_lea.vmem %s1, 88
  %v1070 = vld [vmem:[%s1069] sm:$0xff]
  %1071 = vst [vmem:[%s1068] sm:$0xff] %v1070
  %s1072 = scalar_lea.vmem %s3, 96
  %s1073 = scalar_lea.vmem %s1, 96
  %v1074 = vld [vmem:[%s1073] sm:$0xff]
  %1075 = vst [vmem:[%s1072] sm:$0xff] %v1074
  %s1076 = scalar_lea.vmem %s3, 104
  %s1077 = scalar_lea.vmem %s1, 104
  %v1078 = vld [vmem:[%s1077] sm:$0xff]
  %1079 = vst [vmem:[%s1076] sm:$0xff] %v1078
  %s1080 = scalar_lea.vmem %s3, 112
  %s1081 = scalar_lea.vmem %s1, 112
  %v1082 = vld [vmem:[%s1081] sm:$0xff]
  %1083 = vst [vmem:[%s1080] sm:$0xff] %v1082
  %s1084 = scalar_lea.vmem %s3, 120
  %s1085 = scalar_lea.vmem %s1, 120
  %v1086 = vld [vmem:[%s1085] sm:$0xff]
  %1087 = vst [vmem:[%s1084] sm:$0xff] %v1086
  %s1088 = scalar_lea.vmem %s3, 128
  %s1089 = scalar_lea.vmem %s1, 128
  %v1090 = vld [vmem:[%s1089] sm:$0xff]
  %1091 = vst [vmem:[%s1088] sm:$0xff] %v1090
  %s1092 = scalar_lea.vmem %s3, 136
  %s1093 = scalar_lea.vmem %s1, 136
  %v1094 = vld [vmem:[%s1093] sm:$0xff]
  %1095 = vst [vmem:[%s1092] sm:$0xff] %v1094
  %s1096 = scalar_lea.vmem %s3, 144
  %s1097 = scalar_lea.vmem %s1, 144
  %v1098 = vld [vmem:[%s1097] sm:$0xff]
  %1099 = vst [vmem:[%s1096] sm:$0xff] %v1098
  %s1100 = scalar_lea.vmem %s3, 152
  %s1101 = scalar_lea.vmem %s1, 152
  %v1102 = vld [vmem:[%s1101] sm:$0xff]
  %1103 = vst [vmem:[%s1100] sm:$0xff] %v1102
  %s1104 = scalar_lea.vmem %s3, 160
  %s1105 = scalar_lea.vmem %s1, 160
  %v1106 = vld [vmem:[%s1105] sm:$0xff]
  %1107 = vst [vmem:[%s1104] sm:$0xff] %v1106
  %s1108 = scalar_lea.vmem %s3, 168
  %s1109 = scalar_lea.vmem %s1, 168
  %v1110 = vld [vmem:[%s1109] sm:$0xff]
  %1111 = vst [vmem:[%s1108] sm:$0xff] %v1110
  %s1112 = scalar_lea.vmem %s3, 176
  %s1113 = scalar_lea.vmem %s1, 176
  %v1114 = vld [vmem:[%s1113] sm:$0xff]
  %1115 = vst [vmem:[%s1112] sm:$0xff] %v1114
  %s1116 = scalar_lea.vmem %s3, 184
  %s1117 = scalar_lea.vmem %s1, 184
  %v1118 = vld [vmem:[%s1117] sm:$0xff]
  %1119 = vst [vmem:[%s1116] sm:$0xff] %v1118
  %s1120 = scalar_lea.vmem %s3, 192
  %s1121 = scalar_lea.vmem %s1, 192
  %v1122 = vld [vmem:[%s1121] sm:$0xff]
  %1123 = vst [vmem:[%s1120] sm:$0xff] %v1122
  %s1124 = scalar_lea.vmem %s3, 200
  %s1125 = scalar_lea.vmem %s1, 200
  %v1126 = vld [vmem:[%s1125] sm:$0xff]
  %1127 = vst [vmem:[%s1124] sm:$0xff] %v1126
  %s1128 = scalar_lea.vmem %s3, 208
  %s1129 = scalar_lea.vmem %s1, 208
  %v1130 = vld [vmem:[%s1129] sm:$0xff]
  %1131 = vst [vmem:[%s1128] sm:$0xff] %v1130
  %s1132 = scalar_lea.vmem %s3, 216
  %s1133 = scalar_lea.vmem %s1, 216
  %v1134 = vld [vmem:[%s1133] sm:$0xff]
  %1135 = vst [vmem:[%s1132] sm:$0xff] %v1134
  %s1136 = scalar_lea.vmem %s3, 224
  %s1137 = scalar_lea.vmem %s1, 224
  %v1138 = vld [vmem:[%s1137] sm:$0xff]
  %1139 = vst [vmem:[%s1136] sm:$0xff] %v1138
  %s1140 = scalar_lea.vmem %s3, 232
  %s1141 = scalar_lea.vmem %s1, 232
  %v1142 = vld [vmem:[%s1141] sm:$0xff]
  %1143 = vst [vmem:[%s1140] sm:$0xff] %v1142
  %s1144 = scalar_lea.vmem %s3, 240
  %s1145 = scalar_lea.vmem %s1, 240
  %v1146 = vld [vmem:[%s1145] sm:$0xff]
  %1147 = vst [vmem:[%s1144] sm:$0xff] %v1146
  %s1148 = scalar_lea.vmem %s3, 248
  %s1149 = scalar_lea.vmem %s1, 248
  %v1150 = vld [vmem:[%s1149] sm:$0xff]
  %1151 = vst [vmem:[%s1148] sm:$0xff] %v1150
  %s1152 = scalar_lea.vmem %s3, 256
  %s1153 = scalar_lea.vmem %s1, 256
  %v1154 = vld [vmem:[%s1153] sm:$0xff]
  %1155 = vst [vmem:[%s1152] sm:$0xff] %v1154
  %s1156 = scalar_lea.vmem %s3, 264
  %s1157 = scalar_lea.vmem %s1, 264
  %v1158 = vld [vmem:[%s1157] sm:$0xff]
  %1159 = vst [vmem:[%s1156] sm:$0xff] %v1158
  %s1160 = scalar_lea.vmem %s3, 272
  %s1161 = scalar_lea.vmem %s1, 272
  %v1162 = vld [vmem:[%s1161] sm:$0xff]
  %1163 = vst [vmem:[%s1160] sm:$0xff] %v1162
  %s1164 = scalar_lea.vmem %s3, 280
  %s1165 = scalar_lea.vmem %s1, 280
  %v1166 = vld [vmem:[%s1165] sm:$0xff]
  %1167 = vst [vmem:[%s1164] sm:$0xff] %v1166
  %s1168 = scalar_lea.vmem %s3, 288
  %s1169 = scalar_lea.vmem %s1, 288
  %v1170 = vld [vmem:[%s1169] sm:$0xff]
  %1171 = vst [vmem:[%s1168] sm:$0xff] %v1170
  %s1172 = scalar_lea.vmem %s3, 296
  %s1173 = scalar_lea.vmem %s1, 296
  %v1174 = vld [vmem:[%s1173] sm:$0xff]
  %1175 = vst [vmem:[%s1172] sm:$0xff] %v1174
  %s1176 = scalar_lea.vmem %s3, 304
  %s1177 = scalar_lea.vmem %s1, 304
  %v1178 = vld [vmem:[%s1177] sm:$0xff]
  %1179 = vst [vmem:[%s1176] sm:$0xff] %v1178
  %s1180 = scalar_lea.vmem %s3, 312
  %s1181 = scalar_lea.vmem %s1, 312
  %v1182 = vld [vmem:[%s1181] sm:$0xff]
  %1183 = vst [vmem:[%s1180] sm:$0xff] %v1182
  %s1184 = scalar_lea.vmem %s3, 320
  %s1185 = scalar_lea.vmem %s1, 320
  %v1186 = vld [vmem:[%s1185] sm:$0xff]
  %1187 = vst [vmem:[%s1184] sm:$0xff] %v1186
  %s1188 = scalar_lea.vmem %s3, 328
  %s1189 = scalar_lea.vmem %s1, 328
  %v1190 = vld [vmem:[%s1189] sm:$0xff]
  %1191 = vst [vmem:[%s1188] sm:$0xff] %v1190
  %s1192 = scalar_lea.vmem %s3, 336
  %s1193 = scalar_lea.vmem %s1, 336
  %v1194 = vld [vmem:[%s1193] sm:$0xff]
  %1195 = vst [vmem:[%s1192] sm:$0xff] %v1194
  %s1196 = scalar_lea.vmem %s3, 344
  %s1197 = scalar_lea.vmem %s1, 344
  %v1198 = vld [vmem:[%s1197] sm:$0xff]
  %1199 = vst [vmem:[%s1196] sm:$0xff] %v1198
  %s1200 = scalar_lea.vmem %s3, 352
  %s1201 = scalar_lea.vmem %s1, 352
  %v1202 = vld [vmem:[%s1201] sm:$0xff]
  %1203 = vst [vmem:[%s1200] sm:$0xff] %v1202
  %s1204 = scalar_lea.vmem %s3, 360
  %s1205 = scalar_lea.vmem %s1, 360
  %v1206 = vld [vmem:[%s1205] sm:$0xff]
  %1207 = vst [vmem:[%s1204] sm:$0xff] %v1206
  %s1208 = scalar_lea.vmem %s3, 368
  %s1209 = scalar_lea.vmem %s1, 368
  %v1210 = vld [vmem:[%s1209] sm:$0xff]
  %1211 = vst [vmem:[%s1208] sm:$0xff] %v1210
  %s1212 = scalar_lea.vmem %s3, 376
  %s1213 = scalar_lea.vmem %s1, 376
  %v1214 = vld [vmem:[%s1213] sm:$0xff]
  %1215 = vst [vmem:[%s1212] sm:$0xff] %v1214
  %s1216 = scalar_lea.vmem %s3, 384
  %s1217 = scalar_lea.vmem %s1, 384
  %v1218 = vld [vmem:[%s1217] sm:$0xff]
  %1219 = vst [vmem:[%s1216] sm:$0xff] %v1218
  %s1220 = scalar_lea.vmem %s3, 392
  %s1221 = scalar_lea.vmem %s1, 392
  %v1222 = vld [vmem:[%s1221] sm:$0xff]
  %1223 = vst [vmem:[%s1220] sm:$0xff] %v1222
  %s1224 = scalar_lea.vmem %s3, 400
  %s1225 = scalar_lea.vmem %s1, 400
  %v1226 = vld [vmem:[%s1225] sm:$0xff]
  %1227 = vst [vmem:[%s1224] sm:$0xff] %v1226
  %s1228 = scalar_lea.vmem %s3, 408
  %s1229 = scalar_lea.vmem %s1, 408
  %v1230 = vld [vmem:[%s1229] sm:$0xff]
  %1231 = vst [vmem:[%s1228] sm:$0xff] %v1230
  %s1232 = scalar_lea.vmem %s3, 416
  %s1233 = scalar_lea.vmem %s1, 416
  %v1234 = vld [vmem:[%s1233] sm:$0xff]
  %1235 = vst [vmem:[%s1232] sm:$0xff] %v1234
  %s1236 = scalar_lea.vmem %s3, 424
  %s1237 = scalar_lea.vmem %s1, 424
  %v1238 = vld [vmem:[%s1237] sm:$0xff]
  %1239 = vst [vmem:[%s1236] sm:$0xff] %v1238
  %s1240 = scalar_lea.vmem %s3, 432
  %s1241 = scalar_lea.vmem %s1, 432
  %v1242 = vld [vmem:[%s1241] sm:$0xff]
  %1243 = vst [vmem:[%s1240] sm:$0xff] %v1242
  %s1244 = scalar_lea.vmem %s3, 440
  %s1245 = scalar_lea.vmem %s1, 440
  %v1246 = vld [vmem:[%s1245] sm:$0xff]
  %1247 = vst [vmem:[%s1244] sm:$0xff] %v1246
  %s1248 = scalar_lea.vmem %s3, 448
  %s1249 = scalar_lea.vmem %s1, 448
  %v1250 = vld [vmem:[%s1249] sm:$0xff]
  %1251 = vst [vmem:[%s1248] sm:$0xff] %v1250
  %s1252 = scalar_lea.vmem %s3, 456
  %s1253 = scalar_lea.vmem %s1, 456
  %v1254 = vld [vmem:[%s1253] sm:$0xff]
  %1255 = vst [vmem:[%s1252] sm:$0xff] %v1254
  %s1256 = scalar_lea.vmem %s3, 464
  %s1257 = scalar_lea.vmem %s1, 464
  %v1258 = vld [vmem:[%s1257] sm:$0xff]
  %1259 = vst [vmem:[%s1256] sm:$0xff] %v1258
  %s1260 = scalar_lea.vmem %s3, 472
  %s1261 = scalar_lea.vmem %s1, 472
  %v1262 = vld [vmem:[%s1261] sm:$0xff]
  %1263 = vst [vmem:[%s1260] sm:$0xff] %v1262
  %s1264 = scalar_lea.vmem %s3, 480
  %s1265 = scalar_lea.vmem %s1, 480
  %v1266 = vld [vmem:[%s1265] sm:$0xff]
  %1267 = vst [vmem:[%s1264] sm:$0xff] %v1266
  %s1268 = scalar_lea.vmem %s3, 488
  %s1269 = scalar_lea.vmem %s1, 488
  %v1270 = vld [vmem:[%s1269] sm:$0xff]
  %1271 = vst [vmem:[%s1268] sm:$0xff] %v1270
  %s1272 = scalar_lea.vmem %s3, 496
  %s1273 = scalar_lea.vmem %s1, 496
  %v1274 = vld [vmem:[%s1273] sm:$0xff]
  %1275 = vst [vmem:[%s1272] sm:$0xff] %v1274
  %s1276 = scalar_lea.vmem %s3, 504
  %s1277 = scalar_lea.vmem %s1, 504
  %v1278 = vld [vmem:[%s1277] sm:$0xff]
  %1279 = vst [vmem:[%s1276] sm:$0xff] %v1278
  %s1280 = scalar_lea.vmem %s3, 512
  %s1281 = scalar_lea.vmem %s1, 512
  %v1282 = vld [vmem:[%s1281] sm:$0xff]
  %1283 = vst [vmem:[%s1280] sm:$0xff] %v1282
  %s1284 = scalar_lea.vmem %s3, 520
  %s1285 = scalar_lea.vmem %s1, 520
  %v1286 = vld [vmem:[%s1285] sm:$0xff]
  %1287 = vst [vmem:[%s1284] sm:$0xff] %v1286
  %s1288 = scalar_lea.vmem %s3, 528
  %s1289 = scalar_lea.vmem %s1, 528
  %v1290 = vld [vmem:[%s1289] sm:$0xff]
  %1291 = vst [vmem:[%s1288] sm:$0xff] %v1290
  %s1292 = scalar_lea.vmem %s3, 536
  %s1293 = scalar_lea.vmem %s1, 536
  %v1294 = vld [vmem:[%s1293] sm:$0xff]
  %1295 = vst [vmem:[%s1292] sm:$0xff] %v1294
  %s1296 = scalar_lea.vmem %s3, 544
  %s1297 = scalar_lea.vmem %s1, 544
  %v1298 = vld [vmem:[%s1297] sm:$0xff]
  %1299 = vst [vmem:[%s1296] sm:$0xff] %v1298
  %s1300 = scalar_lea.vmem %s3, 552
  %s1301 = scalar_lea.vmem %s1, 552
  %v1302 = vld [vmem:[%s1301] sm:$0xff]
  %1303 = vst [vmem:[%s1300] sm:$0xff] %v1302
  %s1304 = scalar_lea.vmem %s3, 560
  %s1305 = scalar_lea.vmem %s1, 560
  %v1306 = vld [vmem:[%s1305] sm:$0xff]
  %1307 = vst [vmem:[%s1304] sm:$0xff] %v1306
  %s1308 = scalar_lea.vmem %s3, 568
  %s1309 = scalar_lea.vmem %s1, 568
  %v1310 = vld [vmem:[%s1309] sm:$0xff]
  %1311 = vst [vmem:[%s1308] sm:$0xff] %v1310
  %s1312 = scalar_lea.vmem %s3, 576
  %s1313 = scalar_lea.vmem %s1, 576
  %v1314 = vld [vmem:[%s1313] sm:$0xff]
  %1315 = vst [vmem:[%s1312] sm:$0xff] %v1314
  %s1316 = scalar_lea.vmem %s3, 584
  %s1317 = scalar_lea.vmem %s1, 584
  %v1318 = vld [vmem:[%s1317] sm:$0xff]
  %1319 = vst [vmem:[%s1316] sm:$0xff] %v1318
  %s1320 = scalar_lea.vmem %s3, 592
  %s1321 = scalar_lea.vmem %s1, 592
  %v1322 = vld [vmem:[%s1321] sm:$0xff]
  %1323 = vst [vmem:[%s1320] sm:$0xff] %v1322
  %s1324 = scalar_lea.vmem %s3, 600
  %s1325 = scalar_lea.vmem %s1, 600
  %v1326 = vld [vmem:[%s1325] sm:$0xff]
  %1327 = vst [vmem:[%s1324] sm:$0xff] %v1326
  %s1328 = scalar_lea.vmem %s3, 608
  %s1329 = scalar_lea.vmem %s1, 608
  %v1330 = vld [vmem:[%s1329] sm:$0xff]
  %1331 = vst [vmem:[%s1328] sm:$0xff] %v1330
  %s1332 = scalar_lea.vmem %s3, 616
  %s1333 = scalar_lea.vmem %s1, 616
  %v1334 = vld [vmem:[%s1333] sm:$0xff]
  %1335 = vst [vmem:[%s1332] sm:$0xff] %v1334
  %s1336 = scalar_lea.vmem %s3, 624
  %s1337 = scalar_lea.vmem %s1, 624
  %v1338 = vld [vmem:[%s1337] sm:$0xff]
  %1339 = vst [vmem:[%s1336] sm:$0xff] %v1338
  %s1340 = scalar_lea.vmem %s3, 632
  %s1341 = scalar_lea.vmem %s1, 632
  %v1342 = vld [vmem:[%s1341] sm:$0xff]
  %1343 = vst [vmem:[%s1340] sm:$0xff] %v1342
  %s1344 = scalar_lea.vmem %s3, 640
  %s1345 = scalar_lea.vmem %s1, 640
  %v1346 = vld [vmem:[%s1345] sm:$0xff]
  %1347 = vst [vmem:[%s1344] sm:$0xff] %v1346
  %s1348 = scalar_lea.vmem %s3, 648
  %s1349 = scalar_lea.vmem %s1, 648
  %v1350 = vld [vmem:[%s1349] sm:$0xff]
  %1351 = vst [vmem:[%s1348] sm:$0xff] %v1350
  %s1352 = scalar_lea.vmem %s3, 656
  %s1353 = scalar_lea.vmem %s1, 656
  %v1354 = vld [vmem:[%s1353] sm:$0xff]
  %1355 = vst [vmem:[%s1352] sm:$0xff] %v1354
  %s1356 = scalar_lea.vmem %s3, 664
  %s1357 = scalar_lea.vmem %s1, 664
  %v1358 = vld [vmem:[%s1357] sm:$0xff]
  %1359 = vst [vmem:[%s1356] sm:$0xff] %v1358
  %s1360 = scalar_lea.vmem %s3, 672
  %s1361 = scalar_lea.vmem %s1, 672
  %v1362 = vld [vmem:[%s1361] sm:$0xff]
  %1363 = vst [vmem:[%s1360] sm:$0xff] %v1362
  %s1364 = scalar_lea.vmem %s3, 680
  %s1365 = scalar_lea.vmem %s1, 680
  %v1366 = vld [vmem:[%s1365] sm:$0xff]
  %1367 = vst [vmem:[%s1364] sm:$0xff] %v1366
  %s1368 = scalar_lea.vmem %s3, 688
  %s1369 = scalar_lea.vmem %s1, 688
  %v1370 = vld [vmem:[%s1369] sm:$0xff]
  %1371 = vst [vmem:[%s1368] sm:$0xff] %v1370
  %s1372 = scalar_lea.vmem %s3, 696
  %s1373 = scalar_lea.vmem %s1, 696
  %v1374 = vld [vmem:[%s1373] sm:$0xff]
  %1375 = vst [vmem:[%s1372] sm:$0xff] %v1374
  %s1376 = scalar_lea.vmem %s3, 704
  %s1377 = scalar_lea.vmem %s1, 704
  %v1378 = vld [vmem:[%s1377] sm:$0xff]
  %1379 = vst [vmem:[%s1376] sm:$0xff] %v1378
  %s1380 = scalar_lea.vmem %s3, 712
  %s1381 = scalar_lea.vmem %s1, 712
  %v1382 = vld [vmem:[%s1381] sm:$0xff]
  %1383 = vst [vmem:[%s1380] sm:$0xff] %v1382
  %s1384 = scalar_lea.vmem %s3, 720
  %s1385 = scalar_lea.vmem %s1, 720
  %v1386 = vld [vmem:[%s1385] sm:$0xff]
  %1387 = vst [vmem:[%s1384] sm:$0xff] %v1386
  %s1388 = scalar_lea.vmem %s3, 728
  %s1389 = scalar_lea.vmem %s1, 728
  %v1390 = vld [vmem:[%s1389] sm:$0xff]
  %1391 = vst [vmem:[%s1388] sm:$0xff] %v1390
  %s1392 = scalar_lea.vmem %s3, 736
  %s1393 = scalar_lea.vmem %s1, 736
  %v1394 = vld [vmem:[%s1393] sm:$0xff]
  %1395 = vst [vmem:[%s1392] sm:$0xff] %v1394
  %s1396 = scalar_lea.vmem %s3, 744
  %s1397 = scalar_lea.vmem %s1, 744
  %v1398 = vld [vmem:[%s1397] sm:$0xff]
  %1399 = vst [vmem:[%s1396] sm:$0xff] %v1398
  %s1400 = scalar_lea.vmem %s3, 752
  %s1401 = scalar_lea.vmem %s1, 752
  %v1402 = vld [vmem:[%s1401] sm:$0xff]
  %1403 = vst [vmem:[%s1400] sm:$0xff] %v1402
  %s1404 = scalar_lea.vmem %s3, 760
  %s1405 = scalar_lea.vmem %s1, 760
  %v1406 = vld [vmem:[%s1405] sm:$0xff]
  %1407 = vst [vmem:[%s1404] sm:$0xff] %v1406
  %s1408 = scalar_lea.vmem %s3, 768
  %s1409 = scalar_lea.vmem %s1, 768
  %v1410 = vld [vmem:[%s1409] sm:$0xff]
  %1411 = vst [vmem:[%s1408] sm:$0xff] %v1410
  %s1412 = scalar_lea.vmem %s3, 776
  %s1413 = scalar_lea.vmem %s1, 776
  %v1414 = vld [vmem:[%s1413] sm:$0xff]
  %1415 = vst [vmem:[%s1412] sm:$0xff] %v1414
  %s1416 = scalar_lea.vmem %s3, 784
  %s1417 = scalar_lea.vmem %s1, 784
  %v1418 = vld [vmem:[%s1417] sm:$0xff]
  %1419 = vst [vmem:[%s1416] sm:$0xff] %v1418
  %s1420 = scalar_lea.vmem %s3, 792
  %s1421 = scalar_lea.vmem %s1, 792
  %v1422 = vld [vmem:[%s1421] sm:$0xff]
  %1423 = vst [vmem:[%s1420] sm:$0xff] %v1422
  %s1424 = scalar_lea.vmem %s3, 800
  %s1425 = scalar_lea.vmem %s1, 800
  %v1426 = vld [vmem:[%s1425] sm:$0xff]
  %1427 = vst [vmem:[%s1424] sm:$0xff] %v1426
  %s1428 = scalar_lea.vmem %s3, 808
  %s1429 = scalar_lea.vmem %s1, 808
  %v1430 = vld [vmem:[%s1429] sm:$0xff]
  %1431 = vst [vmem:[%s1428] sm:$0xff] %v1430
  %s1432 = scalar_lea.vmem %s3, 816
  %s1433 = scalar_lea.vmem %s1, 816
  %v1434 = vld [vmem:[%s1433] sm:$0xff]
  %1435 = vst [vmem:[%s1432] sm:$0xff] %v1434
  %s1436 = scalar_lea.vmem %s3, 824
  %s1437 = scalar_lea.vmem %s1, 824
  %v1438 = vld [vmem:[%s1437] sm:$0xff]
  %1439 = vst [vmem:[%s1436] sm:$0xff] %v1438
  %s1440 = scalar_lea.vmem %s3, 832
  %s1441 = scalar_lea.vmem %s1, 832
  %v1442 = vld [vmem:[%s1441] sm:$0xff]
  %1443 = vst [vmem:[%s1440] sm:$0xff] %v1442
  %s1444 = scalar_lea.vmem %s3, 840
  %s1445 = scalar_lea.vmem %s1, 840
  %v1446 = vld [vmem:[%s1445] sm:$0xff]
  %1447 = vst [vmem:[%s1444] sm:$0xff] %v1446
  %s1448 = scalar_lea.vmem %s3, 848
  %s1449 = scalar_lea.vmem %s1, 848
  %v1450 = vld [vmem:[%s1449] sm:$0xff]
  %1451 = vst [vmem:[%s1448] sm:$0xff] %v1450
  %s1452 = scalar_lea.vmem %s3, 856
  %s1453 = scalar_lea.vmem %s1, 856
  %v1454 = vld [vmem:[%s1453] sm:$0xff]
  %1455 = vst [vmem:[%s1452] sm:$0xff] %v1454
  %s1456 = scalar_lea.vmem %s3, 864
  %s1457 = scalar_lea.vmem %s1, 864
  %v1458 = vld [vmem:[%s1457] sm:$0xff]
  %1459 = vst [vmem:[%s1456] sm:$0xff] %v1458
  %s1460 = scalar_lea.vmem %s3, 872
  %s1461 = scalar_lea.vmem %s1, 872
  %v1462 = vld [vmem:[%s1461] sm:$0xff]
  %1463 = vst [vmem:[%s1460] sm:$0xff] %v1462
  %s1464 = scalar_lea.vmem %s3, 880
  %s1465 = scalar_lea.vmem %s1, 880
  %v1466 = vld [vmem:[%s1465] sm:$0xff]
  %1467 = vst [vmem:[%s1464] sm:$0xff] %v1466
  %s1468 = scalar_lea.vmem %s3, 888
  %s1469 = scalar_lea.vmem %s1, 888
  %v1470 = vld [vmem:[%s1469] sm:$0xff]
  %1471 = vst [vmem:[%s1468] sm:$0xff] %v1470
  %s1472 = scalar_lea.vmem %s3, 896
  %s1473 = scalar_lea.vmem %s1, 896
  %v1474 = vld [vmem:[%s1473] sm:$0xff]
  %1475 = vst [vmem:[%s1472] sm:$0xff] %v1474
  %s1476 = scalar_lea.vmem %s3, 904
  %s1477 = scalar_lea.vmem %s1, 904
  %v1478 = vld [vmem:[%s1477] sm:$0xff]
  %1479 = vst [vmem:[%s1476] sm:$0xff] %v1478
  %s1480 = scalar_lea.vmem %s3, 912
  %s1481 = scalar_lea.vmem %s1, 912
  %v1482 = vld [vmem:[%s1481] sm:$0xff]
  %1483 = vst [vmem:[%s1480] sm:$0xff] %v1482
  %s1484 = scalar_lea.vmem %s3, 920
  %s1485 = scalar_lea.vmem %s1, 920
  %v1486 = vld [vmem:[%s1485] sm:$0xff]
  %1487 = vst [vmem:[%s1484] sm:$0xff] %v1486
  %s1488 = scalar_lea.vmem %s3, 928
  %s1489 = scalar_lea.vmem %s1, 928
  %v1490 = vld [vmem:[%s1489] sm:$0xff]
  %1491 = vst [vmem:[%s1488] sm:$0xff] %v1490
  %s1492 = scalar_lea.vmem %s3, 936
  %s1493 = scalar_lea.vmem %s1, 936
  %v1494 = vld [vmem:[%s1493] sm:$0xff]
  %1495 = vst [vmem:[%s1492] sm:$0xff] %v1494
  %s1496 = scalar_lea.vmem %s3, 944
  %s1497 = scalar_lea.vmem %s1, 944
  %v1498 = vld [vmem:[%s1497] sm:$0xff]
  %1499 = vst [vmem:[%s1496] sm:$0xff] %v1498
  %s1500 = scalar_lea.vmem %s3, 952
  %s1501 = scalar_lea.vmem %s1, 952
  %v1502 = vld [vmem:[%s1501] sm:$0xff]
  %1503 = vst [vmem:[%s1500] sm:$0xff] %v1502
  %s1504 = scalar_lea.vmem %s3, 960
  %s1505 = scalar_lea.vmem %s1, 960
  %v1506 = vld [vmem:[%s1505] sm:$0xff]
  %1507 = vst [vmem:[%s1504] sm:$0xff] %v1506
  %s1508 = scalar_lea.vmem %s3, 968
  %s1509 = scalar_lea.vmem %s1, 968
  %v1510 = vld [vmem:[%s1509] sm:$0xff]
  %1511 = vst [vmem:[%s1508] sm:$0xff] %v1510
  %s1512 = scalar_lea.vmem %s3, 976
  %s1513 = scalar_lea.vmem %s1, 976
  %v1514 = vld [vmem:[%s1513] sm:$0xff]
  %1515 = vst [vmem:[%s1512] sm:$0xff] %v1514
  %s1516 = scalar_lea.vmem %s3, 984
  %s1517 = scalar_lea.vmem %s1, 984
  %v1518 = vld [vmem:[%s1517] sm:$0xff]
  %1519 = vst [vmem:[%s1516] sm:$0xff] %v1518
  %s1520 = scalar_lea.vmem %s3, 992
  %s1521 = scalar_lea.vmem %s1, 992
  %v1522 = vld [vmem:[%s1521] sm:$0xff]
  %1523 = vst [vmem:[%s1520] sm:$0xff] %v1522
  %s1524 = scalar_lea.vmem %s3, 1000
  %s1525 = scalar_lea.vmem %s1, 1000
  %v1526 = vld [vmem:[%s1525] sm:$0xff]
  %1527 = vst [vmem:[%s1524] sm:$0xff] %v1526
  %s1528 = scalar_lea.vmem %s3, 1008
  %s1529 = scalar_lea.vmem %s1, 1008
  %v1530 = vld [vmem:[%s1529] sm:$0xff]
  %1531 = vst [vmem:[%s1528] sm:$0xff] %v1530
  %s1532 = scalar_lea.vmem %s3, 1016
  %s1533 = scalar_lea.vmem %s1, 1016
  %v1534 = vld [vmem:[%s1533] sm:$0xff]
  %1535 = vst [vmem:[%s1532] sm:$0xff] %v1534
  %s1536 = scalar_lea.vmem %s3, 1024
  %s1537 = scalar_lea.vmem %s1, 1024
  %v1538 = vld [vmem:[%s1537] sm:$0xff]
  %1539 = vst [vmem:[%s1536] sm:$0xff] %v1538
  %s1540 = scalar_lea.vmem %s3, 1032
  %s1541 = scalar_lea.vmem %s1, 1032
  %v1542 = vld [vmem:[%s1541] sm:$0xff]
  %1543 = vst [vmem:[%s1540] sm:$0xff] %v1542
  %s1544 = scalar_lea.vmem %s3, 1040
  %s1545 = scalar_lea.vmem %s1, 1040
  %v1546 = vld [vmem:[%s1545] sm:$0xff]
  %1547 = vst [vmem:[%s1544] sm:$0xff] %v1546
  %s1548 = scalar_lea.vmem %s3, 1048
  %s1549 = scalar_lea.vmem %s1, 1048
  %v1550 = vld [vmem:[%s1549] sm:$0xff]
  %1551 = vst [vmem:[%s1548] sm:$0xff] %v1550
  %s1552 = scalar_lea.vmem %s3, 1056
  %s1553 = scalar_lea.vmem %s1, 1056
  %v1554 = vld [vmem:[%s1553] sm:$0xff]
  %1555 = vst [vmem:[%s1552] sm:$0xff] %v1554
  %s1556 = scalar_lea.vmem %s3, 1064
  %s1557 = scalar_lea.vmem %s1, 1064
  %v1558 = vld [vmem:[%s1557] sm:$0xff]
  %1559 = vst [vmem:[%s1556] sm:$0xff] %v1558
  %s1560 = scalar_lea.vmem %s3, 1072
  %s1561 = scalar_lea.vmem %s1, 1072
  %v1562 = vld [vmem:[%s1561] sm:$0xff]
  %1563 = vst [vmem:[%s1560] sm:$0xff] %v1562
  %s1564 = scalar_lea.vmem %s3, 1080
  %s1565 = scalar_lea.vmem %s1, 1080
  %v1566 = vld [vmem:[%s1565] sm:$0xff]
  %1567 = vst [vmem:[%s1564] sm:$0xff] %v1566
  %s1568 = scalar_lea.vmem %s3, 1088
  %s1569 = scalar_lea.vmem %s1, 1088
  %v1570 = vld [vmem:[%s1569] sm:$0xff]
  %1571 = vst [vmem:[%s1568] sm:$0xff] %v1570
  %s1572 = scalar_lea.vmem %s3, 1096
  %s1573 = scalar_lea.vmem %s1, 1096
  %v1574 = vld [vmem:[%s1573] sm:$0xff]
  %1575 = vst [vmem:[%s1572] sm:$0xff] %v1574
  %s1576 = scalar_lea.vmem %s3, 1104
  %s1577 = scalar_lea.vmem %s1, 1104
  %v1578 = vld [vmem:[%s1577] sm:$0xff]
  %1579 = vst [vmem:[%s1576] sm:$0xff] %v1578
  %s1580 = scalar_lea.vmem %s3, 1112
  %s1581 = scalar_lea.vmem %s1, 1112
  %v1582 = vld [vmem:[%s1581] sm:$0xff]
  %1583 = vst [vmem:[%s1580] sm:$0xff] %v1582
  %s1584 = scalar_lea.vmem %s3, 1120
  %s1585 = scalar_lea.vmem %s1, 1120
  %v1586 = vld [vmem:[%s1585] sm:$0xff]
  %1587 = vst [vmem:[%s1584] sm:$0xff] %v1586
  %s1588 = scalar_lea.vmem %s3, 1128
  %s1589 = scalar_lea.vmem %s1, 1128
  %v1590 = vld [vmem:[%s1589] sm:$0xff]
  %1591 = vst [vmem:[%s1588] sm:$0xff] %v1590
  %s1592 = scalar_lea.vmem %s3, 1136
  %s1593 = scalar_lea.vmem %s1, 1136
  %v1594 = vld [vmem:[%s1593] sm:$0xff]
  %1595 = vst [vmem:[%s1592] sm:$0xff] %v1594
  %s1596 = scalar_lea.vmem %s3, 1144
  %s1597 = scalar_lea.vmem %s1, 1144
  %v1598 = vld [vmem:[%s1597] sm:$0xff]
  %1599 = vst [vmem:[%s1596] sm:$0xff] %v1598
  %s1600 = scalar_lea.vmem %s3, 1152
  %s1601 = scalar_lea.vmem %s1, 1152
  %v1602 = vld [vmem:[%s1601] sm:$0xff]
  %1603 = vst [vmem:[%s1600] sm:$0xff] %v1602
  %s1604 = scalar_lea.vmem %s3, 1160
  %s1605 = scalar_lea.vmem %s1, 1160
  %v1606 = vld [vmem:[%s1605] sm:$0xff]
  %1607 = vst [vmem:[%s1604] sm:$0xff] %v1606
  %s1608 = scalar_lea.vmem %s3, 1168
  %s1609 = scalar_lea.vmem %s1, 1168
  %v1610 = vld [vmem:[%s1609] sm:$0xff]
  %1611 = vst [vmem:[%s1608] sm:$0xff] %v1610
  %s1612 = scalar_lea.vmem %s3, 1176
  %s1613 = scalar_lea.vmem %s1, 1176
  %v1614 = vld [vmem:[%s1613] sm:$0xff]
  %1615 = vst [vmem:[%s1612] sm:$0xff] %v1614
  %s1616 = scalar_lea.vmem %s3, 1184
  %s1617 = scalar_lea.vmem %s1, 1184
  %v1618 = vld [vmem:[%s1617] sm:$0xff]
  %1619 = vst [vmem:[%s1616] sm:$0xff] %v1618
  %s1620 = scalar_lea.vmem %s3, 1192
  %s1621 = scalar_lea.vmem %s1, 1192
  %v1622 = vld [vmem:[%s1621] sm:$0xff]
  %1623 = vst [vmem:[%s1620] sm:$0xff] %v1622
  %s1624 = scalar_lea.vmem %s3, 1200
  %s1625 = scalar_lea.vmem %s1, 1200
  %v1626 = vld [vmem:[%s1625] sm:$0xff]
  %1627 = vst [vmem:[%s1624] sm:$0xff] %v1626
  %s1628 = scalar_lea.vmem %s3, 1208
  %s1629 = scalar_lea.vmem %s1, 1208
  %v1630 = vld [vmem:[%s1629] sm:$0xff]
  %1631 = vst [vmem:[%s1628] sm:$0xff] %v1630
  %s1632 = scalar_lea.vmem %s3, 1216
  %s1633 = scalar_lea.vmem %s1, 1216
  %v1634 = vld [vmem:[%s1633] sm:$0xff]
  %1635 = vst [vmem:[%s1632] sm:$0xff] %v1634
  %s1636 = scalar_lea.vmem %s3, 1224
  %s1637 = scalar_lea.vmem %s1, 1224
  %v1638 = vld [vmem:[%s1637] sm:$0xff]
  %1639 = vst [vmem:[%s1636] sm:$0xff] %v1638
  %s1640 = scalar_lea.vmem %s3, 1232
  %s1641 = scalar_lea.vmem %s1, 1232
  %v1642 = vld [vmem:[%s1641] sm:$0xff]
  %1643 = vst [vmem:[%s1640] sm:$0xff] %v1642
  %s1644 = scalar_lea.vmem %s3, 1240
  %s1645 = scalar_lea.vmem %s1, 1240
  %v1646 = vld [vmem:[%s1645] sm:$0xff]
  %1647 = vst [vmem:[%s1644] sm:$0xff] %v1646
  %s1648 = scalar_lea.vmem %s3, 1248
  %s1649 = scalar_lea.vmem %s1, 1248
  %v1650 = vld [vmem:[%s1649] sm:$0xff]
  %1651 = vst [vmem:[%s1648] sm:$0xff] %v1650
  %s1652 = scalar_lea.vmem %s3, 1256
  %s1653 = scalar_lea.vmem %s1, 1256
  %v1654 = vld [vmem:[%s1653] sm:$0xff]
  %1655 = vst [vmem:[%s1652] sm:$0xff] %v1654
  %s1656 = scalar_lea.vmem %s3, 1264
  %s1657 = scalar_lea.vmem %s1, 1264
  %v1658 = vld [vmem:[%s1657] sm:$0xff]
  %1659 = vst [vmem:[%s1656] sm:$0xff] %v1658
  %s1660 = scalar_lea.vmem %s3, 1272
  %s1661 = scalar_lea.vmem %s1, 1272
  %v1662 = vld [vmem:[%s1661] sm:$0xff]
  %1663 = vst [vmem:[%s1660] sm:$0xff] %v1662
  %s1664 = scalar_lea.vmem %s3, 1280
  %s1665 = scalar_lea.vmem %s1, 1280
  %v1666 = vld [vmem:[%s1665] sm:$0xff]
  %1667 = vst [vmem:[%s1664] sm:$0xff] %v1666
  %s1668 = scalar_lea.vmem %s3, 1288
  %s1669 = scalar_lea.vmem %s1, 1288
  %v1670 = vld [vmem:[%s1669] sm:$0xff]
  %1671 = vst [vmem:[%s1668] sm:$0xff] %v1670
  %s1672 = scalar_lea.vmem %s3, 1296
  %s1673 = scalar_lea.vmem %s1, 1296
  %v1674 = vld [vmem:[%s1673] sm:$0xff]
  %1675 = vst [vmem:[%s1672] sm:$0xff] %v1674
  %s1676 = scalar_lea.vmem %s3, 1304
  %s1677 = scalar_lea.vmem %s1, 1304
  %v1678 = vld [vmem:[%s1677] sm:$0xff]
  %1679 = vst [vmem:[%s1676] sm:$0xff] %v1678
  %s1680 = scalar_lea.vmem %s3, 1312
  %s1681 = scalar_lea.vmem %s1, 1312
  %v1682 = vld [vmem:[%s1681] sm:$0xff]
  %1683 = vst [vmem:[%s1680] sm:$0xff] %v1682
  %s1684 = scalar_lea.vmem %s3, 1320
  %s1685 = scalar_lea.vmem %s1, 1320
  %v1686 = vld [vmem:[%s1685] sm:$0xff]
  %1687 = vst [vmem:[%s1684] sm:$0xff] %v1686
  %s1688 = scalar_lea.vmem %s3, 1328
  %s1689 = scalar_lea.vmem %s1, 1328
  %v1690 = vld [vmem:[%s1689] sm:$0xff]
  %1691 = vst [vmem:[%s1688] sm:$0xff] %v1690
  %s1692 = scalar_lea.vmem %s3, 1336
  %s1693 = scalar_lea.vmem %s1, 1336
  %v1694 = vld [vmem:[%s1693] sm:$0xff]
  %1695 = vst [vmem:[%s1692] sm:$0xff] %v1694
  %s1696 = scalar_lea.vmem %s3, 1344
  %s1697 = scalar_lea.vmem %s1, 1344
  %v1698 = vld [vmem:[%s1697] sm:$0xff]
  %1699 = vst [vmem:[%s1696] sm:$0xff] %v1698
  %s1700 = scalar_lea.vmem %s3, 1352
  %s1701 = scalar_lea.vmem %s1, 1352
  %v1702 = vld [vmem:[%s1701] sm:$0xff]
  %1703 = vst [vmem:[%s1700] sm:$0xff] %v1702
  %s1704 = scalar_lea.vmem %s3, 1360
  %s1705 = scalar_lea.vmem %s1, 1360
  %v1706 = vld [vmem:[%s1705] sm:$0xff]
  %1707 = vst [vmem:[%s1704] sm:$0xff] %v1706
  %s1708 = scalar_lea.vmem %s3, 1368
  %s1709 = scalar_lea.vmem %s1, 1368
  %v1710 = vld [vmem:[%s1709] sm:$0xff]
  %1711 = vst [vmem:[%s1708] sm:$0xff] %v1710
  %s1712 = scalar_lea.vmem %s3, 1376
  %s1713 = scalar_lea.vmem %s1, 1376
  %v1714 = vld [vmem:[%s1713] sm:$0xff]
  %1715 = vst [vmem:[%s1712] sm:$0xff] %v1714
  %s1716 = scalar_lea.vmem %s3, 1384
  %s1717 = scalar_lea.vmem %s1, 1384
  %v1718 = vld [vmem:[%s1717] sm:$0xff]
  %1719 = vst [vmem:[%s1716] sm:$0xff] %v1718
  %s1720 = scalar_lea.vmem %s3, 1392
  %s1721 = scalar_lea.vmem %s1, 1392
  %v1722 = vld [vmem:[%s1721] sm:$0xff]
  %1723 = vst [vmem:[%s1720] sm:$0xff] %v1722
  %s1724 = scalar_lea.vmem %s3, 1400
  %s1725 = scalar_lea.vmem %s1, 1400
  %v1726 = vld [vmem:[%s1725] sm:$0xff]
  %1727 = vst [vmem:[%s1724] sm:$0xff] %v1726
  %s1728 = scalar_lea.vmem %s3, 1408
  %s1729 = scalar_lea.vmem %s1, 1408
  %v1730 = vld [vmem:[%s1729] sm:$0xff]
  %1731 = vst [vmem:[%s1728] sm:$0xff] %v1730
  %s1732 = scalar_lea.vmem %s3, 1416
  %s1733 = scalar_lea.vmem %s1, 1416
  %v1734 = vld [vmem:[%s1733] sm:$0xff]
  %1735 = vst [vmem:[%s1732] sm:$0xff] %v1734
  %s1736 = scalar_lea.vmem %s3, 1424
  %s1737 = scalar_lea.vmem %s1, 1424
  %v1738 = vld [vmem:[%s1737] sm:$0xff]
  %1739 = vst [vmem:[%s1736] sm:$0xff] %v1738
  %s1740 = scalar_lea.vmem %s3, 1432
  %s1741 = scalar_lea.vmem %s1, 1432
  %v1742 = vld [vmem:[%s1741] sm:$0xff]
  %1743 = vst [vmem:[%s1740] sm:$0xff] %v1742
  %s1744 = scalar_lea.vmem %s3, 1440
  %s1745 = scalar_lea.vmem %s1, 1440
  %v1746 = vld [vmem:[%s1745] sm:$0xff]
  %1747 = vst [vmem:[%s1744] sm:$0xff] %v1746
  %s1748 = scalar_lea.vmem %s3, 1448
  %s1749 = scalar_lea.vmem %s1, 1448
  %v1750 = vld [vmem:[%s1749] sm:$0xff]
  %1751 = vst [vmem:[%s1748] sm:$0xff] %v1750
  %s1752 = scalar_lea.vmem %s3, 1456
  %s1753 = scalar_lea.vmem %s1, 1456
  %v1754 = vld [vmem:[%s1753] sm:$0xff]
  %1755 = vst [vmem:[%s1752] sm:$0xff] %v1754
  %s1756 = scalar_lea.vmem %s3, 1464
  %s1757 = scalar_lea.vmem %s1, 1464
  %v1758 = vld [vmem:[%s1757] sm:$0xff]
  %1759 = vst [vmem:[%s1756] sm:$0xff] %v1758
  %s1760 = scalar_lea.vmem %s3, 1472
  %s1761 = scalar_lea.vmem %s1, 1472
  %v1762 = vld [vmem:[%s1761] sm:$0xff]
  %1763 = vst [vmem:[%s1760] sm:$0xff] %v1762
  %s1764 = scalar_lea.vmem %s3, 1480
  %s1765 = scalar_lea.vmem %s1, 1480
  %v1766 = vld [vmem:[%s1765] sm:$0xff]
  %1767 = vst [vmem:[%s1764] sm:$0xff] %v1766
  %s1768 = scalar_lea.vmem %s3, 1488
  %s1769 = scalar_lea.vmem %s1, 1488
  %v1770 = vld [vmem:[%s1769] sm:$0xff]
  %1771 = vst [vmem:[%s1768] sm:$0xff] %v1770
  %s1772 = scalar_lea.vmem %s3, 1496
  %s1773 = scalar_lea.vmem %s1, 1496
  %v1774 = vld [vmem:[%s1773] sm:$0xff]
  %1775 = vst [vmem:[%s1772] sm:$0xff] %v1774
  %s1776 = scalar_lea.vmem %s3, 1504
  %s1777 = scalar_lea.vmem %s1, 1504
  %v1778 = vld [vmem:[%s1777] sm:$0xff]
  %1779 = vst [vmem:[%s1776] sm:$0xff] %v1778
  %s1780 = scalar_lea.vmem %s3, 1512
  %s1781 = scalar_lea.vmem %s1, 1512
  %v1782 = vld [vmem:[%s1781] sm:$0xff]
  %1783 = vst [vmem:[%s1780] sm:$0xff] %v1782
  %s1784 = scalar_lea.vmem %s3, 1520
  %s1785 = scalar_lea.vmem %s1, 1520
  %v1786 = vld [vmem:[%s1785] sm:$0xff]
  %1787 = vst [vmem:[%s1784] sm:$0xff] %v1786
  %s1788 = scalar_lea.vmem %s3, 1528
  %s1789 = scalar_lea.vmem %s1, 1528
  %v1790 = vld [vmem:[%s1789] sm:$0xff]
  %1791 = vst [vmem:[%s1788] sm:$0xff] %v1790
  %s1792 = scalar_lea.vmem %s3, 1536
  %s1793 = scalar_lea.vmem %s1, 1536
  %v1794 = vld [vmem:[%s1793] sm:$0xff]
  %1795 = vst [vmem:[%s1792] sm:$0xff] %v1794
  %s1796 = scalar_lea.vmem %s3, 1544
  %s1797 = scalar_lea.vmem %s1, 1544
  %v1798 = vld [vmem:[%s1797] sm:$0xff]
  %1799 = vst [vmem:[%s1796] sm:$0xff] %v1798
  %s1800 = scalar_lea.vmem %s3, 1552
  %s1801 = scalar_lea.vmem %s1, 1552
  %v1802 = vld [vmem:[%s1801] sm:$0xff]
  %1803 = vst [vmem:[%s1800] sm:$0xff] %v1802
  %s1804 = scalar_lea.vmem %s3, 1560
  %s1805 = scalar_lea.vmem %s1, 1560
  %v1806 = vld [vmem:[%s1805] sm:$0xff]
  %1807 = vst [vmem:[%s1804] sm:$0xff] %v1806
  %s1808 = scalar_lea.vmem %s3, 1568
  %s1809 = scalar_lea.vmem %s1, 1568
  %v1810 = vld [vmem:[%s1809] sm:$0xff]
  %1811 = vst [vmem:[%s1808] sm:$0xff] %v1810
  %s1812 = scalar_lea.vmem %s3, 1576
  %s1813 = scalar_lea.vmem %s1, 1576
  %v1814 = vld [vmem:[%s1813] sm:$0xff]
  %1815 = vst [vmem:[%s1812] sm:$0xff] %v1814
  %s1816 = scalar_lea.vmem %s3, 1584
  %s1817 = scalar_lea.vmem %s1, 1584
  %v1818 = vld [vmem:[%s1817] sm:$0xff]
  %1819 = vst [vmem:[%s1816] sm:$0xff] %v1818
  %s1820 = scalar_lea.vmem %s3, 1592
  %s1821 = scalar_lea.vmem %s1, 1592
  %v1822 = vld [vmem:[%s1821] sm:$0xff]
  %1823 = vst [vmem:[%s1820] sm:$0xff] %v1822
  %s1824 = scalar_lea.vmem %s3, 1600
  %s1825 = scalar_lea.vmem %s1, 1600
  %v1826 = vld [vmem:[%s1825] sm:$0xff]
  %1827 = vst [vmem:[%s1824] sm:$0xff] %v1826
  %s1828 = scalar_lea.vmem %s3, 1608
  %s1829 = scalar_lea.vmem %s1, 1608
  %v1830 = vld [vmem:[%s1829] sm:$0xff]
  %1831 = vst [vmem:[%s1828] sm:$0xff] %v1830
  %s1832 = scalar_lea.vmem %s3, 1616
  %s1833 = scalar_lea.vmem %s1, 1616
  %v1834 = vld [vmem:[%s1833] sm:$0xff]
  %1835 = vst [vmem:[%s1832] sm:$0xff] %v1834
  %s1836 = scalar_lea.vmem %s3, 1624
  %s1837 = scalar_lea.vmem %s1, 1624
  %v1838 = vld [vmem:[%s1837] sm:$0xff]
  %1839 = vst [vmem:[%s1836] sm:$0xff] %v1838
  %s1840 = scalar_lea.vmem %s3, 1632
  %s1841 = scalar_lea.vmem %s1, 1632
  %v1842 = vld [vmem:[%s1841] sm:$0xff]
  %1843 = vst [vmem:[%s1840] sm:$0xff] %v1842
  %s1844 = scalar_lea.vmem %s3, 1640
  %s1845 = scalar_lea.vmem %s1, 1640
  %v1846 = vld [vmem:[%s1845] sm:$0xff]
  %1847 = vst [vmem:[%s1844] sm:$0xff] %v1846
  %s1848 = scalar_lea.vmem %s3, 1648
  %s1849 = scalar_lea.vmem %s1, 1648
  %v1850 = vld [vmem:[%s1849] sm:$0xff]
  %1851 = vst [vmem:[%s1848] sm:$0xff] %v1850
  %s1852 = scalar_lea.vmem %s3, 1656
  %s1853 = scalar_lea.vmem %s1, 1656
  %v1854 = vld [vmem:[%s1853] sm:$0xff]
  %1855 = vst [vmem:[%s1852] sm:$0xff] %v1854
  %s1856 = scalar_lea.vmem %s3, 1664
  %s1857 = scalar_lea.vmem %s1, 1664
  %v1858 = vld [vmem:[%s1857] sm:$0xff]
  %1859 = vst [vmem:[%s1856] sm:$0xff] %v1858
  %s1860 = scalar_lea.vmem %s3, 1672
  %s1861 = scalar_lea.vmem %s1, 1672
  %v1862 = vld [vmem:[%s1861] sm:$0xff]
  %1863 = vst [vmem:[%s1860] sm:$0xff] %v1862
  %s1864 = scalar_lea.vmem %s3, 1680
  %s1865 = scalar_lea.vmem %s1, 1680
  %v1866 = vld [vmem:[%s1865] sm:$0xff]
  %1867 = vst [vmem:[%s1864] sm:$0xff] %v1866
  %s1868 = scalar_lea.vmem %s3, 1688
  %s1869 = scalar_lea.vmem %s1, 1688
  %v1870 = vld [vmem:[%s1869] sm:$0xff]
  %1871 = vst [vmem:[%s1868] sm:$0xff] %v1870
  %s1872 = scalar_lea.vmem %s3, 1696
  %s1873 = scalar_lea.vmem %s1, 1696
  %v1874 = vld [vmem:[%s1873] sm:$0xff]
  %1875 = vst [vmem:[%s1872] sm:$0xff] %v1874
  %s1876 = scalar_lea.vmem %s3, 1704
  %s1877 = scalar_lea.vmem %s1, 1704
  %v1878 = vld [vmem:[%s1877] sm:$0xff]
  %1879 = vst [vmem:[%s1876] sm:$0xff] %v1878
  %s1880 = scalar_lea.vmem %s3, 1712
  %s1881 = scalar_lea.vmem %s1, 1712
  %v1882 = vld [vmem:[%s1881] sm:$0xff]
  %1883 = vst [vmem:[%s1880] sm:$0xff] %v1882
  %s1884 = scalar_lea.vmem %s3, 1720
  %s1885 = scalar_lea.vmem %s1, 1720
  %v1886 = vld [vmem:[%s1885] sm:$0xff]
  %1887 = vst [vmem:[%s1884] sm:$0xff] %v1886
  %s1888 = scalar_lea.vmem %s3, 1728
  %s1889 = scalar_lea.vmem %s1, 1728
  %v1890 = vld [vmem:[%s1889] sm:$0xff]
  %1891 = vst [vmem:[%s1888] sm:$0xff] %v1890
  %s1892 = scalar_lea.vmem %s3, 1736
  %s1893 = scalar_lea.vmem %s1, 1736
  %v1894 = vld [vmem:[%s1893] sm:$0xff]
  %1895 = vst [vmem:[%s1892] sm:$0xff] %v1894
  %s1896 = scalar_lea.vmem %s3, 1744
  %s1897 = scalar_lea.vmem %s1, 1744
  %v1898 = vld [vmem:[%s1897] sm:$0xff]
  %1899 = vst [vmem:[%s1896] sm:$0xff] %v1898
  %s1900 = scalar_lea.vmem %s3, 1752
  %s1901 = scalar_lea.vmem %s1, 1752
  %v1902 = vld [vmem:[%s1901] sm:$0xff]
  %1903 = vst [vmem:[%s1900] sm:$0xff] %v1902
  %s1904 = scalar_lea.vmem %s3, 1760
  %s1905 = scalar_lea.vmem %s1, 1760
  %v1906 = vld [vmem:[%s1905] sm:$0xff]
  %1907 = vst [vmem:[%s1904] sm:$0xff] %v1906
  %s1908 = scalar_lea.vmem %s3, 1768
  %s1909 = scalar_lea.vmem %s1, 1768
  %v1910 = vld [vmem:[%s1909] sm:$0xff]
  %1911 = vst [vmem:[%s1908] sm:$0xff] %v1910
  %s1912 = scalar_lea.vmem %s3, 1776
  %s1913 = scalar_lea.vmem %s1, 1776
  %v1914 = vld [vmem:[%s1913] sm:$0xff]
  %1915 = vst [vmem:[%s1912] sm:$0xff] %v1914
  %s1916 = scalar_lea.vmem %s3, 1784
  %s1917 = scalar_lea.vmem %s1, 1784
  %v1918 = vld [vmem:[%s1917] sm:$0xff]
  %1919 = vst [vmem:[%s1916] sm:$0xff] %v1918
  %s1920 = scalar_lea.vmem %s3, 1792
  %s1921 = scalar_lea.vmem %s1, 1792
  %v1922 = vld [vmem:[%s1921] sm:$0xff]
  %1923 = vst [vmem:[%s1920] sm:$0xff] %v1922
  %s1924 = scalar_lea.vmem %s3, 1800
  %s1925 = scalar_lea.vmem %s1, 1800
  %v1926 = vld [vmem:[%s1925] sm:$0xff]
  %1927 = vst [vmem:[%s1924] sm:$0xff] %v1926
  %s1928 = scalar_lea.vmem %s3, 1808
  %s1929 = scalar_lea.vmem %s1, 1808
  %v1930 = vld [vmem:[%s1929] sm:$0xff]
  %1931 = vst [vmem:[%s1928] sm:$0xff] %v1930
  %s1932 = scalar_lea.vmem %s3, 1816
  %s1933 = scalar_lea.vmem %s1, 1816
  %v1934 = vld [vmem:[%s1933] sm:$0xff]
  %1935 = vst [vmem:[%s1932] sm:$0xff] %v1934
  %s1936 = scalar_lea.vmem %s3, 1824
  %s1937 = scalar_lea.vmem %s1, 1824
  %v1938 = vld [vmem:[%s1937] sm:$0xff]
  %1939 = vst [vmem:[%s1936] sm:$0xff] %v1938
  %s1940 = scalar_lea.vmem %s3, 1832
  %s1941 = scalar_lea.vmem %s1, 1832
  %v1942 = vld [vmem:[%s1941] sm:$0xff]
  %1943 = vst [vmem:[%s1940] sm:$0xff] %v1942
  %s1944 = scalar_lea.vmem %s3, 1840
  %s1945 = scalar_lea.vmem %s1, 1840
  %v1946 = vld [vmem:[%s1945] sm:$0xff]
  %1947 = vst [vmem:[%s1944] sm:$0xff] %v1946
  %s1948 = scalar_lea.vmem %s3, 1848
  %s1949 = scalar_lea.vmem %s1, 1848
  %v1950 = vld [vmem:[%s1949] sm:$0xff]
  %1951 = vst [vmem:[%s1948] sm:$0xff] %v1950
  %s1952 = scalar_lea.vmem %s3, 1856
  %s1953 = scalar_lea.vmem %s1, 1856
  %v1954 = vld [vmem:[%s1953] sm:$0xff]
  %1955 = vst [vmem:[%s1952] sm:$0xff] %v1954
  %s1956 = scalar_lea.vmem %s3, 1864
  %s1957 = scalar_lea.vmem %s1, 1864
  %v1958 = vld [vmem:[%s1957] sm:$0xff]
  %1959 = vst [vmem:[%s1956] sm:$0xff] %v1958
  %s1960 = scalar_lea.vmem %s3, 1872
  %s1961 = scalar_lea.vmem %s1, 1872
  %v1962 = vld [vmem:[%s1961] sm:$0xff]
  %1963 = vst [vmem:[%s1960] sm:$0xff] %v1962
  %s1964 = scalar_lea.vmem %s3, 1880
  %s1965 = scalar_lea.vmem %s1, 1880
  %v1966 = vld [vmem:[%s1965] sm:$0xff]
  %1967 = vst [vmem:[%s1964] sm:$0xff] %v1966
  %s1968 = scalar_lea.vmem %s3, 1888
  %s1969 = scalar_lea.vmem %s1, 1888
  %v1970 = vld [vmem:[%s1969] sm:$0xff]
  %1971 = vst [vmem:[%s1968] sm:$0xff] %v1970
  %s1972 = scalar_lea.vmem %s3, 1896
  %s1973 = scalar_lea.vmem %s1, 1896
  %v1974 = vld [vmem:[%s1973] sm:$0xff]
  %1975 = vst [vmem:[%s1972] sm:$0xff] %v1974
  %s1976 = scalar_lea.vmem %s3, 1904
  %s1977 = scalar_lea.vmem %s1, 1904
  %v1978 = vld [vmem:[%s1977] sm:$0xff]
  %1979 = vst [vmem:[%s1976] sm:$0xff] %v1978
  %s1980 = scalar_lea.vmem %s3, 1912
  %s1981 = scalar_lea.vmem %s1, 1912
  %v1982 = vld [vmem:[%s1981] sm:$0xff]
  %1983 = vst [vmem:[%s1980] sm:$0xff] %v1982
  %s1984 = scalar_lea.vmem %s3, 1920
  %s1985 = scalar_lea.vmem %s1, 1920
  %v1986 = vld [vmem:[%s1985] sm:$0xff]
  %1987 = vst [vmem:[%s1984] sm:$0xff] %v1986
  %s1988 = scalar_lea.vmem %s3, 1928
  %s1989 = scalar_lea.vmem %s1, 1928
  %v1990 = vld [vmem:[%s1989] sm:$0xff]
  %1991 = vst [vmem:[%s1988] sm:$0xff] %v1990
  %s1992 = scalar_lea.vmem %s3, 1936
  %s1993 = scalar_lea.vmem %s1, 1936
  %v1994 = vld [vmem:[%s1993] sm:$0xff]
  %1995 = vst [vmem:[%s1992] sm:$0xff] %v1994
  %s1996 = scalar_lea.vmem %s3, 1944
  %s1997 = scalar_lea.vmem %s1, 1944
  %v1998 = vld [vmem:[%s1997] sm:$0xff]
  %1999 = vst [vmem:[%s1996] sm:$0xff] %v1998
  %s2000 = scalar_lea.vmem %s3, 1952
  %s2001 = scalar_lea.vmem %s1, 1952
  %v2002 = vld [vmem:[%s2001] sm:$0xff]
  %2003 = vst [vmem:[%s2000] sm:$0xff] %v2002
  %s2004 = scalar_lea.vmem %s3, 1960
  %s2005 = scalar_lea.vmem %s1, 1960
  %v2006 = vld [vmem:[%s2005] sm:$0xff]
  %2007 = vst [vmem:[%s2004] sm:$0xff] %v2006
  %s2008 = scalar_lea.vmem %s3, 1968
  %s2009 = scalar_lea.vmem %s1, 1968
  %v2010 = vld [vmem:[%s2009] sm:$0xff]
  %2011 = vst [vmem:[%s2008] sm:$0xff] %v2010
  %s2012 = scalar_lea.vmem %s3, 1976
  %s2013 = scalar_lea.vmem %s1, 1976
  %v2014 = vld [vmem:[%s2013] sm:$0xff]
  %2015 = vst [vmem:[%s2012] sm:$0xff] %v2014
  %s2016 = scalar_lea.vmem %s3, 1984
  %s2017 = scalar_lea.vmem %s1, 1984
  %v2018 = vld [vmem:[%s2017] sm:$0xff]
  %2019 = vst [vmem:[%s2016] sm:$0xff] %v2018
  %s2020 = scalar_lea.vmem %s3, 1992
  %s2021 = scalar_lea.vmem %s1, 1992
  %v2022 = vld [vmem:[%s2021] sm:$0xff]
  %2023 = vst [vmem:[%s2020] sm:$0xff] %v2022
  %s2024 = scalar_lea.vmem %s3, 2000
  %s2025 = scalar_lea.vmem %s1, 2000
  %v2026 = vld [vmem:[%s2025] sm:$0xff]
  %2027 = vst [vmem:[%s2024] sm:$0xff] %v2026
  %s2028 = scalar_lea.vmem %s3, 2008
  %s2029 = scalar_lea.vmem %s1, 2008
  %v2030 = vld [vmem:[%s2029] sm:$0xff]
  %2031 = vst [vmem:[%s2028] sm:$0xff] %v2030
  %s2032 = scalar_lea.vmem %s3, 2016
  %s2033 = scalar_lea.vmem %s1, 2016
  %v2034 = vld [vmem:[%s2033] sm:$0xff]
  %2035 = vst [vmem:[%s2032] sm:$0xff] %v2034
  %s2036 = scalar_lea.vmem %s3, 2024
  %s2037 = scalar_lea.vmem %s1, 2024
  %v2038 = vld [vmem:[%s2037] sm:$0xff]
  %2039 = vst [vmem:[%s2036] sm:$0xff] %v2038
  %s2040 = scalar_lea.vmem %s3, 2032
  %s2041 = scalar_lea.vmem %s1, 2032
  %v2042 = vld [vmem:[%s2041] sm:$0xff]
  %2043 = vst [vmem:[%s2040] sm:$0xff] %v2042
  %s2044 = scalar_lea.vmem %s3, 2040
  %s2045 = scalar_lea.vmem %s1, 2040
  %v2046 = vld [vmem:[%s2045] sm:$0xff]
  %2047 = vst [vmem:[%s2044] sm:$0xff] %v2046

</llo_original>
